<compile_context>
chip_gen: v5e
topology: v5e:2x2
jax: 0.10.0
libtpu: 0.0.40
codegen_flags: <defaults>
</compile_context>

<pallas_src>
import jax
import jax.numpy as jnp
import numpy as np
from jax.experimental import pallas as pl
from jax.experimental.pallas import tpu as pltpu


def _up_kernel(x_ref, e_ref, w_ref, b_ref, o_ref):
    """One (image n, folded-row tile t) grid step.

    x_ref: (1, C_in, th, GW)   VMEM input rows; GW = g*W lanes (g folded input rows per block row)
    e_ref: (4, GW, GL)         VMEM constant 0/1 expansion matrices; GL = 4*g*W
    w_ref: (C_in*C_out*4,)     SMEM: w_ref[(ci*C_out+co)*4 + 2p + q] = W[ci, co, p, q]
    b_ref: (C_out,)            SMEM bias
    o_ref: (1, C_out, th, GL)  VMEM output rows (folded free view of (N, C_out, 2H, 2W))
    """
    c_in = x_ref.shape[1]
    c_out = o_ref.shape[1]

    # Hoist input-channel tiles; each is reused C_out * 4 times.
    xs = [x_ref[0, ci] for ci in range(c_in)]                       # each (th, GW)

    for co in range(c_out):
        acc = None
        for t in range(4):                                          # tap t = 2*p + q
            # VPU channel mix for this (co, tap): scalar weights broadcast from SMEM.
            mixed = xs[0] * w_ref[(0 * c_out + co) * 4 + t]
            for ci in range(1, c_in):
                mixed = mixed + xs[ci] * w_ref[(ci * c_out + co) * 4 + t]
            # MXU lane scatter: place columns at lanes (2e+p)*2W + 2c + q.
            part = jnp.dot(mixed, e_ref[t], preferred_element_type=jnp.float32)
            acc = part if acc is None else acc + part
        o_ref[0, co] = (acc + b_ref[co]).astype(o_ref.dtype)        # one dense full-width store


def _fold_factor(H, W):
    """Smallest divisor g of H such that the folded output row has >= 128 lanes (g*4W >= 128)."""
    for d in range(1, H + 1):
        if H % d == 0 and d * 4 * W >= 128:
            return d
    return H


def _pick_row_tile(N, Hg, GW, GL, C_in, C_out, budget):
    """Largest legal folded-row tile whose per-step VMEM footprint fits the budget."""
    def step_bytes(th):
        x_blk = C_in * th * GW * 4
        o_blk = C_out * th * GL * 4
        e_blk = 4 * GW * GL * 4
        temps = C_in * th * GW * 4 + th * GL * 4 + th * GW * 4      # xs + acc + mixed
        return 2 * (x_blk + o_blk) + 2 * e_blk + temps              # double-buffered blocks

    cands = sorted({d for d in range(8, Hg + 1, 8) if Hg % d == 0} | {Hg})
    feas = [c for c in cands if step_bytes(c) <= budget]
    th = max(feas) if feas else min(cands)
    # Prefer an even total grid-step count so both v7x TensorCores get equal work.
    if (N * (Hg // th)) % 2 == 1:
        alt = [c for c in cands if c < th and step_bytes(c) <= budget
               and (N * (Hg // c)) % 2 == 0]
        if alt and 2 * max(alt) >= th:
            th = max(alt)
    return th


def up_forward(x, weight, bias):
    """ConvTranspose2d(C_in, C_out, 2, stride=2) forward (the `up` module).

    x:      (N, C_in, H, W)      float32 NCHW
    weight: (C_in, C_out, 2, 2)  float32 (PyTorch ConvTranspose2d layout)
    bias:   (C_out,)             float32
    returns (N, C_out, 2H, 2W)   float32
    """
    N, C_in, H, W = x.shape
    C_out = weight.shape[1]
    assert weight.shape == (C_in, C_out, 2, 2) and bias.shape == (C_out,)

    g = _fold_factor(H, W)
    Hg, GW, GL = H // g, g * W, 4 * g * W

    # Generation-aware VMEM budgets (v7x: 64 MiB physical, v5e/v6e: 128 MiB).
    try:
        vmem_cap = int(pltpu.get_tpu_info().vmem_capacity_bytes)
    except Exception:
        vmem_cap = 64 * 1024 * 1024                                 # conservative (v7x) fallback
    block_budget = max(8 * 1024 * 1024, int(vmem_cap * 0.45))
    vmem_limit = max(32 * 1024 * 1024,
                     min(int(vmem_cap * 0.75), vmem_cap - 8 * 1024 * 1024))

    th = _pick_row_tile(N, Hg, GW, GL, C_in, C_out, block_budget)

    # Free views only: fold g input rows into the lane axis.
    x_v = x.reshape(N, C_in, Hg, GW)

    # Constant 0/1 expansion matrices: source lane e*W + c -> output lane (2e+p)*2W + 2c + q.
    e_np = np.zeros((4, GW, GL), np.float32)
    for p in range(2):
        for q in range(2):
            t = 2 * p + q
            for e in range(g):
                for c in range(W):
                    e_np[t, e * W + c, (2 * e + p) * 2 * W + 2 * c + q] = 1.0
    e_mats = jnp.asarray(e_np)

    w_flat = weight.reshape(-1).astype(jnp.float32)                 # (C_in*C_out*4,) SMEM scalars
    b_flat = bias.astype(jnp.float32)                               # (C_out,)        SMEM scalars

    out_elems = N * C_out * 4 * H * W
    cost = pl.CostEstimate(
        flops=2 * C_in * out_elems + 8 * GW * out_elems,
        transcendentals=0,
        bytes_accessed=4 * (x.size + e_mats.size + w_flat.size + b_flat.size + out_elems),
    )

    y = pl.pallas_call(
        _up_kernel,
        out_shape=jax.ShapeDtypeStruct((N, C_out, Hg, GL), x.dtype),
        grid_spec=pltpu.PrefetchScalarGridSpec(
            num_scalar_prefetch=0,
            grid=(N, Hg // th),
            in_specs=[
                pl.BlockSpec((1, C_in, th, GW), lambda n, t: (n, 0, t, 0)),
                pl.BlockSpec((4, GW, GL), lambda n, t: (0, 0, 0)),
                pl.BlockSpec(memory_space=pltpu.MemorySpace.SMEM),
                pl.BlockSpec(memory_space=pltpu.MemorySpace.SMEM),
            ],
            out_specs=pl.BlockSpec((1, C_out, th, GL), lambda n, t: (n, 0, t, 0)),
        ),
        compiler_params=pltpu.CompilerParams(
            dimension_semantics=("parallel", "parallel"),
            vmem_limit_bytes=vmem_limit,
        ),
        cost_estimate=cost,
    )(x_v, e_mats, w_flat, b_flat)

    # Free contiguous view back to the 2x-upsampled NCHW layout.
    return y.reshape(N, C_out, 2 * H, 2 * W)


def up_reference(x, weight, bias):
    """Pure-JAX reference of ConvTranspose2d(in_ch, in_ch, 2, stride=2)."""
    N, C_in, H, W = x.shape
    C_out = weight.shape[1]
    y = jnp.einsum("ncij,cokl->noikjl", x, weight)
    y = y.reshape(N, C_out, 2 * H, 2 * W)
    return y + bias[None, :, None, None]


if __name__ == "__main__":
    key = jax.random.PRNGKey(0)
    k_x, k_w, k_b = jax.random.split(key, 3)

    N, C, H, W = 2, 4, 16, 16  # small NCHW input consistent with the module
    x = jax.random.normal(k_x, (N, C, H, W), dtype=jnp.float32)

    # Synthetic ConvTranspose2d(in_ch=C, out_ch=C, k=2, s=2) parameters.
    weight = jax.random.normal(k_w, (C, C, 2, 2), dtype=jnp.float32) * 0.1
    bias = jax.random.normal(k_b, (C,), dtype=jnp.float32) * 0.1

    y = jax.block_until_ready(up_forward(x, weight, bias))
    y_ref = up_reference(x, weight, bias)

    assert y.shape == (N, C, 2 * H, 2 * W), y.shape
    # Tolerance also covers the case where the 0/1 expansion matmul runs at the MXU's bf16 pass.
    assert jnp.allclose(y, y_ref, atol=2e-3, rtol=2e-3), float(jnp.max(jnp.abs(y - y_ref)))

    print("KERNEL_OK")
</pallas_src>

<mosaic_0001>
module attributes {stable_mosaic.version = 11 : i64} {
  func.func @_up_kernel(%arg0: i32, %arg1: i32, %arg2: memref<1x4x8x32xf32, #tpu.memory_space<vmem>>, %arg3: memref<4x32x128xf32, #tpu.memory_space<vmem>>, %arg4: memref<64xf32, #tpu.memory_space<smem>>, %arg5: memref<4xf32, #tpu.memory_space<smem>>, %arg6: memref<1x4x8x128xf32, #tpu.memory_space<vmem>>) attributes {dimension_semantics = [#tpu.dimension_semantics<parallel>, #tpu.dimension_semantics<parallel>], iteration_bounds = array<i64: 2, 1>, scalar_prefetch = 0 : i64, scratch_operands = 0 : i64, tpu.core_type = #tpu.core_type<tc>, window_params = [{transform_indices = @transform_0, window_bounds = array<i64: 1, 4, 8, 32>}, {pipeline_mode = #tpu.pipeline_mode<synchronous>, transform_indices = @transform_1, window_bounds = array<i64: 4, 32, 128>}, {transform_indices = @transform_2, window_bounds = array<i64: 64>}, {transform_indices = @transform_3, window_bounds = array<i64: 4>}, {transform_indices = @transform_4, window_bounds = array<i64: 1, 4, 8, 128>}]} {
    %c0 = arith.constant 0 : index
    %c0_0 = arith.constant 0 : index
    %c0_1 = arith.constant 0 : index
    %c0_2 = arith.constant 0 : index
    %0 = vector.load %arg2[%c0, %c0_0, %c0_1, %c0_2] : memref<1x4x8x32xf32, #tpu.memory_space<vmem>>, vector<1x1x8x32xf32>
    %1 = vector.shape_cast %0 : vector<1x1x8x32xf32> to vector<8x32xf32>
    %c0_3 = arith.constant 0 : index
    %c1 = arith.constant 1 : index
    %c0_4 = arith.constant 0 : index
    %c0_5 = arith.constant 0 : index
    %2 = vector.load %arg2[%c0_3, %c1, %c0_4, %c0_5] : memref<1x4x8x32xf32, #tpu.memory_space<vmem>>, vector<1x1x8x32xf32>
    %3 = vector.shape_cast %2 : vector<1x1x8x32xf32> to vector<8x32xf32>
    %c0_6 = arith.constant 0 : index
    %c2 = arith.constant 2 : index
    %c0_7 = arith.constant 0 : index
    %c0_8 = arith.constant 0 : index
    %4 = vector.load %arg2[%c0_6, %c2, %c0_7, %c0_8] : memref<1x4x8x32xf32, #tpu.memory_space<vmem>>, vector<1x1x8x32xf32>
    %5 = vector.shape_cast %4 : vector<1x1x8x32xf32> to vector<8x32xf32>
    %c0_9 = arith.constant 0 : index
    %c3 = arith.constant 3 : index
    %c0_10 = arith.constant 0 : index
    %c0_11 = arith.constant 0 : index
    %6 = vector.load %arg2[%c0_9, %c3, %c0_10, %c0_11] : memref<1x4x8x32xf32, #tpu.memory_space<vmem>>, vector<1x1x8x32xf32>
    %7 = vector.shape_cast %6 : vector<1x1x8x32xf32> to vector<8x32xf32>
    %c0_12 = arith.constant 0 : index
    %8 = memref.load %arg4[%c0_12] : memref<64xf32, #tpu.memory_space<smem>>
    %9 = vector.broadcast %8 : f32 to vector<8x32xf32>
    %10 = arith.mulf %1, %9 : vector<8x32xf32>
    %c16 = arith.constant 16 : index
    %11 = memref.load %arg4[%c16] : memref<64xf32, #tpu.memory_space<smem>>
    %12 = vector.broadcast %11 : f32 to vector<8x32xf32>
    %13 = arith.mulf %3, %12 : vector<8x32xf32>
    %14 = arith.addf %10, %13 : vector<8x32xf32>
    %c32 = arith.constant 32 : index
    %15 = memref.load %arg4[%c32] : memref<64xf32, #tpu.memory_space<smem>>
    %16 = vector.broadcast %15 : f32 to vector<8x32xf32>
    %17 = arith.mulf %5, %16 : vector<8x32xf32>
    %18 = arith.addf %14, %17 : vector<8x32xf32>
    %c48 = arith.constant 48 : index
    %19 = memref.load %arg4[%c48] : memref<64xf32, #tpu.memory_space<smem>>
    %20 = vector.broadcast %19 : f32 to vector<8x32xf32>
    %21 = arith.mulf %7, %20 : vector<8x32xf32>
    %22 = arith.addf %18, %21 : vector<8x32xf32>
    %c0_13 = arith.constant 0 : index
    %c0_14 = arith.constant 0 : index
    %c0_15 = arith.constant 0 : index
    %23 = vector.load %arg3[%c0_13, %c0_14, %c0_15] : memref<4x32x128xf32, #tpu.memory_space<vmem>>, vector<1x32x128xf32>
    %24 = vector.shape_cast %23 : vector<1x32x128xf32> to vector<32x128xf32>
    %cst = arith.constant dense<0.000000e+00> : vector<8x128xf32>
    %25 = tpu.matmul %22, %24, %cst {dimension_numbers = #tpu.dot_dimension_numbers<[1], [0], [0], [1], [0, 0, 1, 1], [], []>} : vector<8x32xf32>, vector<32x128xf32>, vector<8x128xf32> -> vector<8x128xf32>
    %c1_16 = arith.constant 1 : index
    %26 = memref.load %arg4[%c1_16] : memref<64xf32, #tpu.memory_space<smem>>
    %27 = vector.broadcast %26 : f32 to vector<8x32xf32>
    %28 = arith.mulf %1, %27 : vector<8x32xf32>
    %c17 = arith.constant 17 : index
    %29 = memref.load %arg4[%c17] : memref<64xf32, #tpu.memory_space<smem>>
    %30 = vector.broadcast %29 : f32 to vector<8x32xf32>
    %31 = arith.mulf %3, %30 : vector<8x32xf32>
    %32 = arith.addf %28, %31 : vector<8x32xf32>
    %c33 = arith.constant 33 : index
    %33 = memref.load %arg4[%c33] : memref<64xf32, #tpu.memory_space<smem>>
    %34 = vector.broadcast %33 : f32 to vector<8x32xf32>
    %35 = arith.mulf %5, %34 : vector<8x32xf32>
    %36 = arith.addf %32, %35 : vector<8x32xf32>
    %c49 = arith.constant 49 : index
    %37 = memref.load %arg4[%c49] : memref<64xf32, #tpu.memory_space<smem>>
    %38 = vector.broadcast %37 : f32 to vector<8x32xf32>
    %39 = arith.mulf %7, %38 : vector<8x32xf32>
    %40 = arith.addf %36, %39 : vector<8x32xf32>
    %c1_17 = arith.constant 1 : index
    %c0_18 = arith.constant 0 : index
    %c0_19 = arith.constant 0 : index
    %41 = vector.load %arg3[%c1_17, %c0_18, %c0_19] : memref<4x32x128xf32, #tpu.memory_space<vmem>>, vector<1x32x128xf32>
    %42 = vector.shape_cast %41 : vector<1x32x128xf32> to vector<32x128xf32>
    %cst_20 = arith.constant dense<0.000000e+00> : vector<8x128xf32>
    %43 = tpu.matmul %40, %42, %cst_20 {dimension_numbers = #tpu.dot_dimension_numbers<[1], [0], [0], [1], [0, 0, 1, 1], [], []>} : vector<8x32xf32>, vector<32x128xf32>, vector<8x128xf32> -> vector<8x128xf32>
    %44 = arith.addf %25, %43 : vector<8x128xf32>
    %c2_21 = arith.constant 2 : index
    %45 = memref.load %arg4[%c2_21] : memref<64xf32, #tpu.memory_space<smem>>
    %46 = vector.broadcast %45 : f32 to vector<8x32xf32>
    %47 = arith.mulf %1, %46 : vector<8x32xf32>
    %c18 = arith.constant 18 : index
    %48 = memref.load %arg4[%c18] : memref<64xf32, #tpu.memory_space<smem>>
    %49 = vector.broadcast %48 : f32 to vector<8x32xf32>
    %50 = arith.mulf %3, %49 : vector<8x32xf32>
    %51 = arith.addf %47, %50 : vector<8x32xf32>
    %c34 = arith.constant 34 : index
    %52 = memref.load %arg4[%c34] : memref<64xf32, #tpu.memory_space<smem>>
    %53 = vector.broadcast %52 : f32 to vector<8x32xf32>
    %54 = arith.mulf %5, %53 : vector<8x32xf32>
    %55 = arith.addf %51, %54 : vector<8x32xf32>
    %c50 = arith.constant 50 : index
    %56 = memref.load %arg4[%c50] : memref<64xf32, #tpu.memory_space<smem>>
    %57 = vector.broadcast %56 : f32 to vector<8x32xf32>
    %58 = arith.mulf %7, %57 : vector<8x32xf32>
    %59 = arith.addf %55, %58 : vector<8x32xf32>
    %c2_22 = arith.constant 2 : index
    %c0_23 = arith.constant 0 : index
    %c0_24 = arith.constant 0 : index
    %60 = vector.load %arg3[%c2_22, %c0_23, %c0_24] : memref<4x32x128xf32, #tpu.memory_space<vmem>>, vector<1x32x128xf32>
    %61 = vector.shape_cast %60 : vector<1x32x128xf32> to vector<32x128xf32>
    %cst_25 = arith.constant dense<0.000000e+00> : vector<8x128xf32>
    %62 = tpu.matmul %59, %61, %cst_25 {dimension_numbers = #tpu.dot_dimension_numbers<[1], [0], [0], [1], [0, 0, 1, 1], [], []>} : vector<8x32xf32>, vector<32x128xf32>, vector<8x128xf32> -> vector<8x128xf32>
    %63 = arith.addf %44, %62 : vector<8x128xf32>
    %c3_26 = arith.constant 3 : index
    %64 = memref.load %arg4[%c3_26] : memref<64xf32, #tpu.memory_space<smem>>
    %65 = vector.broadcast %64 : f32 to vector<8x32xf32>
    %66 = arith.mulf %1, %65 : vector<8x32xf32>
    %c19 = arith.constant 19 : index
    %67 = memref.load %arg4[%c19] : memref<64xf32, #tpu.memory_space<smem>>
    %68 = vector.broadcast %67 : f32 to vector<8x32xf32>
    %69 = arith.mulf %3, %68 : vector<8x32xf32>
    %70 = arith.addf %66, %69 : vector<8x32xf32>
    %c35 = arith.constant 35 : index
    %71 = memref.load %arg4[%c35] : memref<64xf32, #tpu.memory_space<smem>>
    %72 = vector.broadcast %71 : f32 to vector<8x32xf32>
    %73 = arith.mulf %5, %72 : vector<8x32xf32>
    %74 = arith.addf %70, %73 : vector<8x32xf32>
    %c51 = arith.constant 51 : index
    %75 = memref.load %arg4[%c51] : memref<64xf32, #tpu.memory_space<smem>>
    %76 = vector.broadcast %75 : f32 to vector<8x32xf32>
    %77 = arith.mulf %7, %76 : vector<8x32xf32>
    %78 = arith.addf %74, %77 : vector<8x32xf32>
    %c3_27 = arith.constant 3 : index
    %c0_28 = arith.constant 0 : index
    %c0_29 = arith.constant 0 : index
    %79 = vector.load %arg3[%c3_27, %c0_28, %c0_29] : memref<4x32x128xf32, #tpu.memory_space<vmem>>, vector<1x32x128xf32>
    %80 = vector.shape_cast %79 : vector<1x32x128xf32> to vector<32x128xf32>
    %cst_30 = arith.constant dense<0.000000e+00> : vector<8x128xf32>
    %81 = tpu.matmul %78, %80, %cst_30 {dimension_numbers = #tpu.dot_dimension_numbers<[1], [0], [0], [1], [0, 0, 1, 1], [], []>} : vector<8x32xf32>, vector<32x128xf32>, vector<8x128xf32> -> vector<8x128xf32>
    %82 = arith.addf %63, %81 : vector<8x128xf32>
    %c0_31 = arith.constant 0 : index
    %83 = memref.load %arg5[%c0_31] : memref<4xf32, #tpu.memory_space<smem>>
    %84 = vector.broadcast %83 : f32 to vector<8x128xf32>
    %85 = arith.addf %82, %84 : vector<8x128xf32>
    %c0_32 = arith.constant 0 : index
    %c0_33 = arith.constant 0 : index
    %c0_34 = arith.constant 0 : index
    %c0_35 = arith.constant 0 : index
    %86 = vector.load %arg6[%c0_32, %c0_33, %c0_34, %c0_35] : memref<1x4x8x128xf32, #tpu.memory_space<vmem>>, vector<1x1x8x128xf32>
    %87 = vector.shape_cast %86 : vector<1x1x8x128xf32> to vector<8x128xf32>
    %88 = vector.shape_cast %85 : vector<8x128xf32> to vector<1x1x8x128xf32>
    tpu.vector_store %arg6[%c0_32, %c0_33, %c0_34, %c0_35], %88 {strides = array<i32>} : memref<1x4x8x128xf32, #tpu.memory_space<vmem>>, vector<1x1x8x128xf32>,
    %c4 = arith.constant 4 : index
    %89 = memref.load %arg4[%c4] : memref<64xf32, #tpu.memory_space<smem>>
    %90 = vector.broadcast %89 : f32 to vector<8x32xf32>
    %91 = arith.mulf %1, %90 : vector<8x32xf32>
    %c20 = arith.constant 20 : index
    %92 = memref.load %arg4[%c20] : memref<64xf32, #tpu.memory_space<smem>>
    %93 = vector.broadcast %92 : f32 to vector<8x32xf32>
    %94 = arith.mulf %3, %93 : vector<8x32xf32>
    %95 = arith.addf %91, %94 : vector<8x32xf32>
    %c36 = arith.constant 36 : index
    %96 = memref.load %arg4[%c36] : memref<64xf32, #tpu.memory_space<smem>>
    %97 = vector.broadcast %96 : f32 to vector<8x32xf32>
    %98 = arith.mulf %5, %97 : vector<8x32xf32>
    %99 = arith.addf %95, %98 : vector<8x32xf32>
    %c52 = arith.constant 52 : index
    %100 = memref.load %arg4[%c52] : memref<64xf32, #tpu.memory_space<smem>>
    %101 = vector.broadcast %100 : f32 to vector<8x32xf32>
    %102 = arith.mulf %7, %101 : vector<8x32xf32>
    %103 = arith.addf %99, %102 : vector<8x32xf32>
    %c0_36 = arith.constant 0 : index
    %c0_37 = arith.constant 0 : index
    %c0_38 = arith.constant 0 : index
    %104 = vector.load %arg3[%c0_36, %c0_37, %c0_38] : memref<4x32x128xf32, #tpu.memory_space<vmem>>, vector<1x32x128xf32>
    %105 = vector.shape_cast %104 : vector<1x32x128xf32> to vector<32x128xf32>
    %cst_39 = arith.constant dense<0.000000e+00> : vector<8x128xf32>
    %106 = tpu.matmul %103, %105, %cst_39 {dimension_numbers = #tpu.dot_dimension_numbers<[1], [0], [0], [1], [0, 0, 1, 1], [], []>} : vector<8x32xf32>, vector<32x128xf32>, vector<8x128xf32> -> vector<8x128xf32>
    %c5 = arith.constant 5 : index
    %107 = memref.load %arg4[%c5] : memref<64xf32, #tpu.memory_space<smem>>
    %108 = vector.broadcast %107 : f32 to vector<8x32xf32>
    %109 = arith.mulf %1, %108 : vector<8x32xf32>
    %c21 = arith.constant 21 : index
    %110 = memref.load %arg4[%c21] : memref<64xf32, #tpu.memory_space<smem>>
    %111 = vector.broadcast %110 : f32 to vector<8x32xf32>
    %112 = arith.mulf %3, %111 : vector<8x32xf32>
    %113 = arith.addf %109, %112 : vector<8x32xf32>
    %c37 = arith.constant 37 : index
    %114 = memref.load %arg4[%c37] : memref<64xf32, #tpu.memory_space<smem>>
    %115 = vector.broadcast %114 : f32 to vector<8x32xf32>
    %116 = arith.mulf %5, %115 : vector<8x32xf32>
    %117 = arith.addf %113, %116 : vector<8x32xf32>
    %c53 = arith.constant 53 : index
    %118 = memref.load %arg4[%c53] : memref<64xf32, #tpu.memory_space<smem>>
    %119 = vector.broadcast %118 : f32 to vector<8x32xf32>
    %120 = arith.mulf %7, %119 : vector<8x32xf32>
    %121 = arith.addf %117, %120 : vector<8x32xf32>
    %c1_40 = arith.constant 1 : index
    %c0_41 = arith.constant 0 : index
    %c0_42 = arith.constant 0 : index
    %122 = vector.load %arg3[%c1_40, %c0_41, %c0_42] : memref<4x32x128xf32, #tpu.memory_space<vmem>>, vector<1x32x128xf32>
    %123 = vector.shape_cast %122 : vector<1x32x128xf32> to vector<32x128xf32>
    %cst_43 = arith.constant dense<0.000000e+00> : vector<8x128xf32>
    %124 = tpu.matmul %121, %123, %cst_43 {dimension_numbers = #tpu.dot_dimension_numbers<[1], [0], [0], [1], [0, 0, 1, 1], [], []>} : vector<8x32xf32>, vector<32x128xf32>, vector<8x128xf32> -> vector<8x128xf32>
    %125 = arith.addf %106, %124 : vector<8x128xf32>
    %c6 = arith.constant 6 : index
    %126 = memref.load %arg4[%c6] : memref<64xf32, #tpu.memory_space<smem>>
    %127 = vector.broadcast %126 : f32 to vector<8x32xf32>
    %128 = arith.mulf %1, %127 : vector<8x32xf32>
    %c22 = arith.constant 22 : index
    %129 = memref.load %arg4[%c22] : memref<64xf32, #tpu.memory_space<smem>>
    %130 = vector.broadcast %129 : f32 to vector<8x32xf32>
    %131 = arith.mulf %3, %130 : vector<8x32xf32>
    %132 = arith.addf %128, %131 : vector<8x32xf32>
    %c38 = arith.constant 38 : index
    %133 = memref.load %arg4[%c38] : memref<64xf32, #tpu.memory_space<smem>>
    %134 = vector.broadcast %133 : f32 to vector<8x32xf32>
    %135 = arith.mulf %5, %134 : vector<8x32xf32>
    %136 = arith.addf %132, %135 : vector<8x32xf32>
    %c54 = arith.constant 54 : index
    %137 = memref.load %arg4[%c54] : memref<64xf32, #tpu.memory_space<smem>>
    %138 = vector.broadcast %137 : f32 to vector<8x32xf32>
    %139 = arith.mulf %7, %138 : vector<8x32xf32>
    %140 = arith.addf %136, %139 : vector<8x32xf32>
    %c2_44 = arith.constant 2 : index
    %c0_45 = arith.constant 0 : index
    %c0_46 = arith.constant 0 : index
    %141 = vector.load %arg3[%c2_44, %c0_45, %c0_46] : memref<4x32x128xf32, #tpu.memory_space<vmem>>, vector<1x32x128xf32>
    %142 = vector.shape_cast %141 : vector<1x32x128xf32> to vector<32x128xf32>
    %cst_47 = arith.constant dense<0.000000e+00> : vector<8x128xf32>
    %143 = tpu.matmul %140, %142, %cst_47 {dimension_numbers = #tpu.dot_dimension_numbers<[1], [0], [0], [1], [0, 0, 1, 1], [], []>} : vector<8x32xf32>, vector<32x128xf32>, vector<8x128xf32> -> vector<8x128xf32>
    %144 = arith.addf %125, %143 : vector<8x128xf32>
    %c7 = arith.constant 7 : index
    %145 = memref.load %arg4[%c7] : memref<64xf32, #tpu.memory_space<smem>>
    %146 = vector.broadcast %145 : f32 to vector<8x32xf32>
    %147 = arith.mulf %1, %146 : vector<8x32xf32>
    %c23 = arith.constant 23 : index
    %148 = memref.load %arg4[%c23] : memref<64xf32, #tpu.memory_space<smem>>
    %149 = vector.broadcast %148 : f32 to vector<8x32xf32>
    %150 = arith.mulf %3, %149 : vector<8x32xf32>
    %151 = arith.addf %147, %150 : vector<8x32xf32>
    %c39 = arith.constant 39 : index
    %152 = memref.load %arg4[%c39] : memref<64xf32, #tpu.memory_space<smem>>
    %153 = vector.broadcast %152 : f32 to vector<8x32xf32>
    %154 = arith.mulf %5, %153 : vector<8x32xf32>
    %155 = arith.addf %151, %154 : vector<8x32xf32>
    %c55 = arith.constant 55 : index
    %156 = memref.load %arg4[%c55] : memref<64xf32, #tpu.memory_space<smem>>
    %157 = vector.broadcast %156 : f32 to vector<8x32xf32>
    %158 = arith.mulf %7, %157 : vector<8x32xf32>
    %159 = arith.addf %155, %158 : vector<8x32xf32>
    %c3_48 = arith.constant 3 : index
    %c0_49 = arith.constant 0 : index
    %c0_50 = arith.constant 0 : index
    %160 = vector.load %arg3[%c3_48, %c0_49, %c0_50] : memref<4x32x128xf32, #tpu.memory_space<vmem>>, vector<1x32x128xf32>
    %161 = vector.shape_cast %160 : vector<1x32x128xf32> to vector<32x128xf32>
    %cst_51 = arith.constant dense<0.000000e+00> : vector<8x128xf32>
    %162 = tpu.matmul %159, %161, %cst_51 {dimension_numbers = #tpu.dot_dimension_numbers<[1], [0], [0], [1], [0, 0, 1, 1], [], []>} : vector<8x32xf32>, vector<32x128xf32>, vector<8x128xf32> -> vector<8x128xf32>
    %163 = arith.addf %144, %162 : vector<8x128xf32>
    %c1_52 = arith.constant 1 : index
    %164 = memref.load %arg5[%c1_52] : memref<4xf32, #tpu.memory_space<smem>>
    %165 = vector.broadcast %164 : f32 to vector<8x128xf32>
    %166 = arith.addf %163, %165 : vector<8x128xf32>
    %c0_53 = arith.constant 0 : index
    %c1_54 = arith.constant 1 : index
    %c0_55 = arith.constant 0 : index
    %c0_56 = arith.constant 0 : index
    %167 = vector.load %arg6[%c0_53, %c1_54, %c0_55, %c0_56] : memref<1x4x8x128xf32, #tpu.memory_space<vmem>>, vector<1x1x8x128xf32>
    %168 = vector.shape_cast %167 : vector<1x1x8x128xf32> to vector<8x128xf32>
    %169 = vector.shape_cast %166 : vector<8x128xf32> to vector<1x1x8x128xf32>
    tpu.vector_store %arg6[%c0_53, %c1_54, %c0_55, %c0_56], %169 {strides = array<i32>} : memref<1x4x8x128xf32, #tpu.memory_space<vmem>>, vector<1x1x8x128xf32>,
    %c8 = arith.constant 8 : index
    %170 = memref.load %arg4[%c8] : memref<64xf32, #tpu.memory_space<smem>>
    %171 = vector.broadcast %170 : f32 to vector<8x32xf32>
    %172 = arith.mulf %1, %171 : vector<8x32xf32>
    %c24 = arith.constant 24 : index
    %173 = memref.load %arg4[%c24] : memref<64xf32, #tpu.memory_space<smem>>
    %174 = vector.broadcast %173 : f32 to vector<8x32xf32>
    %175 = arith.mulf %3, %174 : vector<8x32xf32>
    %176 = arith.addf %172, %175 : vector<8x32xf32>
    %c40 = arith.constant 40 : index
    %177 = memref.load %arg4[%c40] : memref<64xf32, #tpu.memory_space<smem>>
    %178 = vector.broadcast %177 : f32 to vector<8x32xf32>
    %179 = arith.mulf %5, %178 : vector<8x32xf32>
    %180 = arith.addf %176, %179 : vector<8x32xf32>
    %c56 = arith.constant 56 : index
    %181 = memref.load %arg4[%c56] : memref<64xf32, #tpu.memory_space<smem>>
    %182 = vector.broadcast %181 : f32 to vector<8x32xf32>
    %183 = arith.mulf %7, %182 : vector<8x32xf32>
    %184 = arith.addf %180, %183 : vector<8x32xf32>
    %c0_57 = arith.constant 0 : index
    %c0_58 = arith.constant 0 : index
    %c0_59 = arith.constant 0 : index
    %185 = vector.load %arg3[%c0_57, %c0_58, %c0_59] : memref<4x32x128xf32, #tpu.memory_space<vmem>>, vector<1x32x128xf32>
    %186 = vector.shape_cast %185 : vector<1x32x128xf32> to vector<32x128xf32>
    %cst_60 = arith.constant dense<0.000000e+00> : vector<8x128xf32>
    %187 = tpu.matmul %184, %186, %cst_60 {dimension_numbers = #tpu.dot_dimension_numbers<[1], [0], [0], [1], [0, 0, 1, 1], [], []>} : vector<8x32xf32>, vector<32x128xf32>, vector<8x128xf32> -> vector<8x128xf32>
    %c9 = arith.constant 9 : index
    %188 = memref.load %arg4[%c9] : memref<64xf32, #tpu.memory_space<smem>>
    %189 = vector.broadcast %188 : f32 to vector<8x32xf32>
    %190 = arith.mulf %1, %189 : vector<8x32xf32>
    %c25 = arith.constant 25 : index
    %191 = memref.load %arg4[%c25] : memref<64xf32, #tpu.memory_space<smem>>
    %192 = vector.broadcast %191 : f32 to vector<8x32xf32>
    %193 = arith.mulf %3, %192 : vector<8x32xf32>
    %194 = arith.addf %190, %193 : vector<8x32xf32>
    %c41 = arith.constant 41 : index
    %195 = memref.load %arg4[%c41] : memref<64xf32, #tpu.memory_space<smem>>
    %196 = vector.broadcast %195 : f32 to vector<8x32xf32>
    %197 = arith.mulf %5, %196 : vector<8x32xf32>
    %198 = arith.addf %194, %197 : vector<8x32xf32>
    %c57 = arith.constant 57 : index
    %199 = memref.load %arg4[%c57] : memref<64xf32, #tpu.memory_space<smem>>
    %200 = vector.broadcast %199 : f32 to vector<8x32xf32>
    %201 = arith.mulf %7, %200 : vector<8x32xf32>
    %202 = arith.addf %198, %201 : vector<8x32xf32>
    %c1_61 = arith.constant 1 : index
    %c0_62 = arith.constant 0 : index
    %c0_63 = arith.constant 0 : index
    %203 = vector.load %arg3[%c1_61, %c0_62, %c0_63] : memref<4x32x128xf32, #tpu.memory_space<vmem>>, vector<1x32x128xf32>
    %204 = vector.shape_cast %203 : vector<1x32x128xf32> to vector<32x128xf32>
    %cst_64 = arith.constant dense<0.000000e+00> : vector<8x128xf32>
    %205 = tpu.matmul %202, %204, %cst_64 {dimension_numbers = #tpu.dot_dimension_numbers<[1], [0], [0], [1], [0, 0, 1, 1], [], []>} : vector<8x32xf32>, vector<32x128xf32>, vector<8x128xf32> -> vector<8x128xf32>
    %206 = arith.addf %187, %205 : vector<8x128xf32>
    %c10 = arith.constant 10 : index
    %207 = memref.load %arg4[%c10] : memref<64xf32, #tpu.memory_space<smem>>
    %208 = vector.broadcast %207 : f32 to vector<8x32xf32>
    %209 = arith.mulf %1, %208 : vector<8x32xf32>
    %c26 = arith.constant 26 : index
    %210 = memref.load %arg4[%c26] : memref<64xf32, #tpu.memory_space<smem>>
    %211 = vector.broadcast %210 : f32 to vector<8x32xf32>
    %212 = arith.mulf %3, %211 : vector<8x32xf32>
    %213 = arith.addf %209, %212 : vector<8x32xf32>
    %c42 = arith.constant 42 : index
    %214 = memref.load %arg4[%c42] : memref<64xf32, #tpu.memory_space<smem>>
    %215 = vector.broadcast %214 : f32 to vector<8x32xf32>
    %216 = arith.mulf %5, %215 : vector<8x32xf32>
    %217 = arith.addf %213, %216 : vector<8x32xf32>
    %c58 = arith.constant 58 : index
    %218 = memref.load %arg4[%c58] : memref<64xf32, #tpu.memory_space<smem>>
    %219 = vector.broadcast %218 : f32 to vector<8x32xf32>
    %220 = arith.mulf %7, %219 : vector<8x32xf32>
    %221 = arith.addf %217, %220 : vector<8x32xf32>
    %c2_65 = arith.constant 2 : index
    %c0_66 = arith.constant 0 : index
    %c0_67 = arith.constant 0 : index
    %222 = vector.load %arg3[%c2_65, %c0_66, %c0_67] : memref<4x32x128xf32, #tpu.memory_space<vmem>>, vector<1x32x128xf32>
    %223 = vector.shape_cast %222 : vector<1x32x128xf32> to vector<32x128xf32>
    %cst_68 = arith.constant dense<0.000000e+00> : vector<8x128xf32>
    %224 = tpu.matmul %221, %223, %cst_68 {dimension_numbers = #tpu.dot_dimension_numbers<[1], [0], [0], [1], [0, 0, 1, 1], [], []>} : vector<8x32xf32>, vector<32x128xf32>, vector<8x128xf32> -> vector<8x128xf32>
    %225 = arith.addf %206, %224 : vector<8x128xf32>
    %c11 = arith.constant 11 : index
    %226 = memref.load %arg4[%c11] : memref<64xf32, #tpu.memory_space<smem>>
    %227 = vector.broadcast %226 : f32 to vector<8x32xf32>
    %228 = arith.mulf %1, %227 : vector<8x32xf32>
    %c27 = arith.constant 27 : index
    %229 = memref.load %arg4[%c27] : memref<64xf32, #tpu.memory_space<smem>>
    %230 = vector.broadcast %229 : f32 to vector<8x32xf32>
    %231 = arith.mulf %3, %230 : vector<8x32xf32>
    %232 = arith.addf %228, %231 : vector<8x32xf32>
    %c43 = arith.constant 43 : index
    %233 = memref.load %arg4[%c43] : memref<64xf32, #tpu.memory_space<smem>>
    %234 = vector.broadcast %233 : f32 to vector<8x32xf32>
    %235 = arith.mulf %5, %234 : vector<8x32xf32>
    %236 = arith.addf %232, %235 : vector<8x32xf32>
    %c59 = arith.constant 59 : index
    %237 = memref.load %arg4[%c59] : memref<64xf32, #tpu.memory_space<smem>>
    %238 = vector.broadcast %237 : f32 to vector<8x32xf32>
    %239 = arith.mulf %7, %238 : vector<8x32xf32>
    %240 = arith.addf %236, %239 : vector<8x32xf32>
    %c3_69 = arith.constant 3 : index
    %c0_70 = arith.constant 0 : index
    %c0_71 = arith.constant 0 : index
    %241 = vector.load %arg3[%c3_69, %c0_70, %c0_71] : memref<4x32x128xf32, #tpu.memory_space<vmem>>, vector<1x32x128xf32>
    %242 = vector.shape_cast %241 : vector<1x32x128xf32> to vector<32x128xf32>
    %cst_72 = arith.constant dense<0.000000e+00> : vector<8x128xf32>
    %243 = tpu.matmul %240, %242, %cst_72 {dimension_numbers = #tpu.dot_dimension_numbers<[1], [0], [0], [1], [0, 0, 1, 1], [], []>} : vector<8x32xf32>, vector<32x128xf32>, vector<8x128xf32> -> vector<8x128xf32>
    %244 = arith.addf %225, %243 : vector<8x128xf32>
    %c2_73 = arith.constant 2 : index
    %245 = memref.load %arg5[%c2_73] : memref<4xf32, #tpu.memory_space<smem>>
    %246 = vector.broadcast %245 : f32 to vector<8x128xf32>
    %247 = arith.addf %244, %246 : vector<8x128xf32>
    %c0_74 = arith.constant 0 : index
    %c2_75 = arith.constant 2 : index
    %c0_76 = arith.constant 0 : index
    %c0_77 = arith.constant 0 : index
    %248 = vector.load %arg6[%c0_74, %c2_75, %c0_76, %c0_77] : memref<1x4x8x128xf32, #tpu.memory_space<vmem>>, vector<1x1x8x128xf32>
    %249 = vector.shape_cast %248 : vector<1x1x8x128xf32> to vector<8x128xf32>
    %250 = vector.shape_cast %247 : vector<8x128xf32> to vector<1x1x8x128xf32>
    tpu.vector_store %arg6[%c0_74, %c2_75, %c0_76, %c0_77], %250 {strides = array<i32>} : memref<1x4x8x128xf32, #tpu.memory_space<vmem>>, vector<1x1x8x128xf32>,
    %c12 = arith.constant 12 : index
    %251 = memref.load %arg4[%c12] : memref<64xf32, #tpu.memory_space<smem>>
    %252 = vector.broadcast %251 : f32 to vector<8x32xf32>
    %253 = arith.mulf %1, %252 : vector<8x32xf32>
    %c28 = arith.constant 28 : index
    %254 = memref.load %arg4[%c28] : memref<64xf32, #tpu.memory_space<smem>>
    %255 = vector.broadcast %254 : f32 to vector<8x32xf32>
    %256 = arith.mulf %3, %255 : vector<8x32xf32>
    %257 = arith.addf %253, %256 : vector<8x32xf32>
    %c44 = arith.constant 44 : index
    %258 = memref.load %arg4[%c44] : memref<64xf32, #tpu.memory_space<smem>>
    %259 = vector.broadcast %258 : f32 to vector<8x32xf32>
    %260 = arith.mulf %5, %259 : vector<8x32xf32>
    %261 = arith.addf %257, %260 : vector<8x32xf32>
    %c60 = arith.constant 60 : index
    %262 = memref.load %arg4[%c60] : memref<64xf32, #tpu.memory_space<smem>>
    %263 = vector.broadcast %262 : f32 to vector<8x32xf32>
    %264 = arith.mulf %7, %263 : vector<8x32xf32>
    %265 = arith.addf %261, %264 : vector<8x32xf32>
    %c0_78 = arith.constant 0 : index
    %c0_79 = arith.constant 0 : index
    %c0_80 = arith.constant 0 : index
    %266 = vector.load %arg3[%c0_78, %c0_79, %c0_80] : memref<4x32x128xf32, #tpu.memory_space<vmem>>, vector<1x32x128xf32>
    %267 = vector.shape_cast %266 : vector<1x32x128xf32> to vector<32x128xf32>
    %cst_81 = arith.constant dense<0.000000e+00> : vector<8x128xf32>
    %268 = tpu.matmul %265, %267, %cst_81 {dimension_numbers = #tpu.dot_dimension_numbers<[1], [0], [0], [1], [0, 0, 1, 1], [], []>} : vector<8x32xf32>, vector<32x128xf32>, vector<8x128xf32> -> vector<8x128xf32>
    %c13 = arith.constant 13 : index
    %269 = memref.load %arg4[%c13] : memref<64xf32, #tpu.memory_space<smem>>
    %270 = vector.broadcast %269 : f32 to vector<8x32xf32>
    %271 = arith.mulf %1, %270 : vector<8x32xf32>
    %c29 = arith.constant 29 : index
    %272 = memref.load %arg4[%c29] : memref<64xf32, #tpu.memory_space<smem>>
    %273 = vector.broadcast %272 : f32 to vector<8x32xf32>
    %274 = arith.mulf %3, %273 : vector<8x32xf32>
    %275 = arith.addf %271, %274 : vector<8x32xf32>
    %c45 = arith.constant 45 : index
    %276 = memref.load %arg4[%c45] : memref<64xf32, #tpu.memory_space<smem>>
    %277 = vector.broadcast %276 : f32 to vector<8x32xf32>
    %278 = arith.mulf %5, %277 : vector<8x32xf32>
    %279 = arith.addf %275, %278 : vector<8x32xf32>
    %c61 = arith.constant 61 : index
    %280 = memref.load %arg4[%c61] : memref<64xf32, #tpu.memory_space<smem>>
    %281 = vector.broadcast %280 : f32 to vector<8x32xf32>
    %282 = arith.mulf %7, %281 : vector<8x32xf32>
    %283 = arith.addf %279, %282 : vector<8x32xf32>
    %c1_82 = arith.constant 1 : index
    %c0_83 = arith.constant 0 : index
    %c0_84 = arith.constant 0 : index
    %284 = vector.load %arg3[%c1_82, %c0_83, %c0_84] : memref<4x32x128xf32, #tpu.memory_space<vmem>>, vector<1x32x128xf32>
    %285 = vector.shape_cast %284 : vector<1x32x128xf32> to vector<32x128xf32>
    %cst_85 = arith.constant dense<0.000000e+00> : vector<8x128xf32>
    %286 = tpu.matmul %283, %285, %cst_85 {dimension_numbers = #tpu.dot_dimension_numbers<[1], [0], [0], [1], [0, 0, 1, 1], [], []>} : vector<8x32xf32>, vector<32x128xf32>, vector<8x128xf32> -> vector<8x128xf32>
    %287 = arith.addf %268, %286 : vector<8x128xf32>
    %c14 = arith.constant 14 : index
    %288 = memref.load %arg4[%c14] : memref<64xf32, #tpu.memory_space<smem>>
    %289 = vector.broadcast %288 : f32 to vector<8x32xf32>
    %290 = arith.mulf %1, %289 : vector<8x32xf32>
    %c30 = arith.constant 30 : index
    %291 = memref.load %arg4[%c30] : memref<64xf32, #tpu.memory_space<smem>>
    %292 = vector.broadcast %291 : f32 to vector<8x32xf32>
    %293 = arith.mulf %3, %292 : vector<8x32xf32>
    %294 = arith.addf %290, %293 : vector<8x32xf32>
    %c46 = arith.constant 46 : index
    %295 = memref.load %arg4[%c46] : memref<64xf32, #tpu.memory_space<smem>>
    %296 = vector.broadcast %295 : f32 to vector<8x32xf32>
    %297 = arith.mulf %5, %296 : vector<8x32xf32>
    %298 = arith.addf %294, %297 : vector<8x32xf32>
    %c62 = arith.constant 62 : index
    %299 = memref.load %arg4[%c62] : memref<64xf32, #tpu.memory_space<smem>>
    %300 = vector.broadcast %299 : f32 to vector<8x32xf32>
    %301 = arith.mulf %7, %300 : vector<8x32xf32>
    %302 = arith.addf %298, %301 : vector<8x32xf32>
    %c2_86 = arith.constant 2 : index
    %c0_87 = arith.constant 0 : index
    %c0_88 = arith.constant 0 : index
    %303 = vector.load %arg3[%c2_86, %c0_87, %c0_88] : memref<4x32x128xf32, #tpu.memory_space<vmem>>, vector<1x32x128xf32>
    %304 = vector.shape_cast %303 : vector<1x32x128xf32> to vector<32x128xf32>
    %cst_89 = arith.constant dense<0.000000e+00> : vector<8x128xf32>
    %305 = tpu.matmul %302, %304, %cst_89 {dimension_numbers = #tpu.dot_dimension_numbers<[1], [0], [0], [1], [0, 0, 1, 1], [], []>} : vector<8x32xf32>, vector<32x128xf32>, vector<8x128xf32> -> vector<8x128xf32>
    %306 = arith.addf %287, %305 : vector<8x128xf32>
    %c15 = arith.constant 15 : index
    %307 = memref.load %arg4[%c15] : memref<64xf32, #tpu.memory_space<smem>>
    %308 = vector.broadcast %307 : f32 to vector<8x32xf32>
    %309 = arith.mulf %1, %308 : vector<8x32xf32>
    %c31 = arith.constant 31 : index
    %310 = memref.load %arg4[%c31] : memref<64xf32, #tpu.memory_space<smem>>
    %311 = vector.broadcast %310 : f32 to vector<8x32xf32>
    %312 = arith.mulf %3, %311 : vector<8x32xf32>
    %313 = arith.addf %309, %312 : vector<8x32xf32>
    %c47 = arith.constant 47 : index
    %314 = memref.load %arg4[%c47] : memref<64xf32, #tpu.memory_space<smem>>
    %315 = vector.broadcast %314 : f32 to vector<8x32xf32>
    %316 = arith.mulf %5, %315 : vector<8x32xf32>
    %317 = arith.addf %313, %316 : vector<8x32xf32>
    %c63 = arith.constant 63 : index
    %318 = memref.load %arg4[%c63] : memref<64xf32, #tpu.memory_space<smem>>
    %319 = vector.broadcast %318 : f32 to vector<8x32xf32>
    %320 = arith.mulf %7, %319 : vector<8x32xf32>
    %321 = arith.addf %317, %320 : vector<8x32xf32>
    %c3_90 = arith.constant 3 : index
    %c0_91 = arith.constant 0 : index
    %c0_92 = arith.constant 0 : index
    %322 = vector.load %arg3[%c3_90, %c0_91, %c0_92] : memref<4x32x128xf32, #tpu.memory_space<vmem>>, vector<1x32x128xf32>
    %323 = vector.shape_cast %322 : vector<1x32x128xf32> to vector<32x128xf32>
    %cst_93 = arith.constant dense<0.000000e+00> : vector<8x128xf32>
    %324 = tpu.matmul %321, %323, %cst_93 {dimension_numbers = #tpu.dot_dimension_numbers<[1], [0], [0], [1], [0, 0, 1, 1], [], []>} : vector<8x32xf32>, vector<32x128xf32>, vector<8x128xf32> -> vector<8x128xf32>
    %325 = arith.addf %306, %324 : vector<8x128xf32>
    %c3_94 = arith.constant 3 : index
    %326 = memref.load %arg5[%c3_94] : memref<4xf32, #tpu.memory_space<smem>>
    %327 = vector.broadcast %326 : f32 to vector<8x128xf32>
    %328 = arith.addf %325, %327 : vector<8x128xf32>
    %c0_95 = arith.constant 0 : index
    %c3_96 = arith.constant 3 : index
    %c0_97 = arith.constant 0 : index
    %c0_98 = arith.constant 0 : index
    %329 = vector.load %arg6[%c0_95, %c3_96, %c0_97, %c0_98] : memref<1x4x8x128xf32, #tpu.memory_space<vmem>>, vector<1x1x8x128xf32>
    %330 = vector.shape_cast %329 : vector<1x1x8x128xf32> to vector<8x128xf32>
    %331 = vector.shape_cast %328 : vector<8x128xf32> to vector<1x1x8x128xf32>
    tpu.vector_store %arg6[%c0_95, %c3_96, %c0_97, %c0_98], %331 {strides = array<i32>} : memref<1x4x8x128xf32, #tpu.memory_space<vmem>>, vector<1x1x8x128xf32>,
    return
  }
  func.func @transform_0(%arg0: i32, %arg1: i32) -> (i32, i32, i32, i32) {
    %c0_i32 = arith.constant 0 : i32
    %c0_i32_0 = arith.constant 0 : i32
    %c0_i32_1 = arith.constant 0 : i32
    return %arg0, %c0_i32, %arg1, %c0_i32_0 : i32, i32, i32, i32
  }
  func.func @transform_1(%arg0: i32, %arg1: i32) -> (i32, i32, i32) {
    %c0_i32 = arith.constant 0 : i32
    %c0_i32_0 = arith.constant 0 : i32
    %c0_i32_1 = arith.constant 0 : i32
    %c0_i32_2 = arith.constant 0 : i32
    return %c0_i32, %c0_i32_0, %c0_i32_1 : i32, i32, i32
  }
  func.func @transform_2(%arg0: i32, %arg1: i32) -> i32 {
    %c0_i32 = arith.constant 0 : i32
    %c0_i32_0 = arith.constant 0 : i32
    return %c0_i32 : i32
  }
  func.func @transform_3(%arg0: i32, %arg1: i32) -> i32 {
    %c0_i32 = arith.constant 0 : i32
    %c0_i32_0 = arith.constant 0 : i32
    return %c0_i32 : i32
  }
  func.func @transform_4(%arg0: i32, %arg1: i32) -> (i32, i32, i32, i32) {
    %c0_i32 = arith.constant 0 : i32
    %c0_i32_0 = arith.constant 0 : i32
    %c0_i32_1 = arith.constant 0 : i32
    return %arg0, %c0_i32, %arg1, %c0_i32_0 : i32, i32, i32, i32
  }
}

</mosaic_0001>

<llo_original>
// kernel: tpu_custom_call.1
$region0: #{tpu_custom_call.1}
  #allocation0 [shape = 'u32[]', space=smem, size = 0x4, offset = 0x4, fixed_abs, tag = 'smem constant byte address 0x4 - core index']
  #allocation1 [shape = 'u32[72,128]{1,0:T(1,128)}', space=vmem, size = 0x9000, scoped, tag = 'internal scratch']
  %s0 = inlined_call_operand.hbm [shape: f32[2,4,8,32], index: 0, kind: input, shape index: {}]
  %s1 = inlined_call_operand.hbm [shape: f32[4,32,128], index: 1, kind: input, shape index: {}]
  %s2 = inlined_call_operand.vmem [shape: f32[64], index: 2, kind: input, shape index: {}]
  %s3 = inlined_call_operand.vmem [shape: f32[4], index: 3, kind: input, shape index: {}]
  %s4 = inlined_call_operand.hbm [shape: f32[2,4,8,128], index: 4, kind: output, shape index: {}]
  %s5 = sld [smem:[#allocation0]]
  $region65: #{tpu_custom_call.1} parent=0
    _
  %s7 = ssub.s32 1, %s5
  %s8 = scalar_select 0, %s7, %s5
  $region1: #{tpu_custom_call.1} parent=0
    #allocation2 [shape = 'u8[32768]{0}', space=vmem, size = 0x8000, scoped, tag = 'input window, operand 0']
    #allocation3 [shape = 's32[2]{0}', space=sflag, size = 0x8, scoped, tag = 'scoped memory for tpu_custom_call.1']
    #allocation4 [shape = 's32[2]{0}', space=sflag, size = 0x8, scoped, tag = 'scoped memory for tpu_custom_call.1']
    #allocation5 [shape = 's32[2]{0}', space=sflag, size = 0x8, scoped, tag = 'scoped memory for tpu_custom_call.1']
    #allocation6 [shape = 'u8[65536]{0}', space=vmem, size = 0x10000, scoped, tag = 'input window, operand 1, single buffered']
    #allocation7 [shape = 's32[1]{0}', space=sflag, size = 0x4, scoped, tag = 'scoped memory for tpu_custom_call.1']
    #allocation8 [shape = 'u8[512]{0}', space=smem, size = 0x200, scoped, tag = 'input window, operand 2, single buffered']
    #allocation9 [shape = 'u8[512]{0}', space=smem, size = 0x200, scoped, tag = 'input window, operand 3, single buffered']
    #allocation10 [shape = 's32[1]{0}', space=sflag, size = 0x4, scoped, tag = 'scoped memory for tpu_custom_call.1']
    #allocation11 [shape = 'u8[32768]{0}', space=vmem, size = 0x8000, scoped, tag = 'output window, operand 0']
    %9 = vsyncpa [#allocation3], 0
    %s10 = scalar_lea.sflag [#allocation3], 1
    %11 = vsyncpa %s10, 0
    %12 = vsyncpa [#allocation7], 0
    %13 = vsyncpa [#allocation5], 0
    %14 = vsyncpa [#allocation10], 0
    %15 = vsyncpa [#allocation4], 0
    %s16 = scalar_lea.sflag [#allocation4], 1
    %17 = vsyncpa %s16, 0
    loop: start=0, step=1, limit=4
    $region2: #{tpu_custom_call.1} parent=1 // loop_pre_header
      _
    $region3: #{tpu_custom_call.1} parent=1 // loop_header
      %s19 = sphi 0, %s23
      %p20 = scmp.ge.s32.totalorder %s19, 4
      %s26 = sphi 0, %s38
      %s27 = sphi 0, %s34
      %s28 = sphi 0, %s26
      %s29 = sphi 0, %s27
      %s30 = sphi 0, %s28
      %s31 = sphi 0, %s29
      %s43 = sphi 0, %s45
      %s46 = sphi 0, %s43
      %s47 = sphi 0, %s46
      %s63 = sphi 0, %s47
      %s67 = sphi 0, %s67
      %s69 = sphi 0, %s67
      %s70 = sphi 0, %s69
      %s84 = sphi 0, %s70
      %s88 = sphi 0, %s88
      %s90 = sphi 0, %s88
      %s91 = sphi 0, %s90
      %s105 = sphi 0, %s91
      %s109 = sphi 0, %s109
      %s111 = sphi 0, %s109
      %s112 = sphi 0, %s111
      %s126 = sphi 0, %s112
      %s134 = sphi 0, %s136
      %s137 = sphi 0, %s134
      %s138 = sphi 0, %s137
      %s154 = sphi 0, %s138
    $region4: #{tpu_custom_call.1} parent=1 // loop_header_branch
      %22 = sbr.rel (%p20) target = $region8
    $region5: #{tpu_custom_call.1} parent=1 // loop_body
      %s24 = ssub.s32 %s19, 1
      %s25 = ssub.s32 %s19, 2
      %s32 = sadd.s32 1, %s27
      %p33 = scmp.ge.s32.totalorder %s32, 1
      %s34 = scalar_select %p33, 0, %s32
      %s35 = sadd.s32 1, %s26
      %s36 = scalar_select %p33, %s35, %s26
      %p37 = scmp.ge.s32.totalorder %s36, 2
      %s38 = scalar_select %p37, 0, %s36
      %s39 = ssub.s32 %s26, %s38
      %s40 = ssub.s32 %s27, %s34
      %s41 = sor.u32 %s39, %s40
      %p42 = scmp.eq.s32.totalorder %s41, 0
      %s44 = sadd.s32 %s43, 1
      %s45 = scalar_select %p42, %s43, %s44
      %p48 = pneg %p42
      %p49 = scmp.eq.s32.totalorder %s19, 1
      %p50 = por %p48, %p49
      %p51 = scmp.ne.s32.totalorder %s43, %s46
      %p52 = scmp.eq.s32.totalorder %s19, 0
      %p53 = por %p51, %p52
      %p54 = scmp.ne.s32.totalorder %s43, %s46
      %p55 = scmp.eq.s32.totalorder %s24, 1
      %p56 = por %p54, %p55
      %p57 = scmp.ne.s32.totalorder %s46, %s47
      %p58 = scmp.eq.s32.totalorder %s24, 0
      %p59 = por %p57, %p58
      %p60 = scmp.ne.s32.totalorder %s46, %s47
      %p61 = scmp.eq.s32.totalorder %s25, 1
      %p62 = por %p60, %p61
      %p64 = scmp.ne.s32.totalorder %s47, %s63
      %p65 = scmp.eq.s32.totalorder %s25, 0
      %p66 = por %p64, %p65
      %s68 = sadd.s32 %s67, 1
      %p71 = scmp.eq.s32.totalorder %s19, 1
      %p72 = scmp.ne.s32.totalorder %s67, %s69
      %p73 = scmp.eq.s32.totalorder %s19, 0
      %p74 = por %p72, %p73
      %p75 = scmp.ne.s32.totalorder %s67, %s69
      %p76 = scmp.eq.s32.totalorder %s24, 1
      %p77 = por %p75, %p76
      %p78 = scmp.ne.s32.totalorder %s69, %s70
      %p79 = scmp.eq.s32.totalorder %s24, 0
      %p80 = por %p78, %p79
      %p81 = scmp.ne.s32.totalorder %s69, %s70
      %p82 = scmp.eq.s32.totalorder %s25, 1
      %p83 = por %p81, %p82
      %p85 = scmp.ne.s32.totalorder %s70, %s84
      %p86 = scmp.eq.s32.totalorder %s25, 0
      %p87 = por %p85, %p86
      %s89 = sadd.s32 %s88, 1
      %p92 = scmp.eq.s32.totalorder %s19, 1
      %p93 = scmp.ne.s32.totalorder %s88, %s90
      %p94 = scmp.eq.s32.totalorder %s19, 0
      %p95 = por %p93, %p94
      %p96 = scmp.ne.s32.totalorder %s88, %s90
      %p97 = scmp.eq.s32.totalorder %s24, 1
      %p98 = por %p96, %p97
      %p99 = scmp.ne.s32.totalorder %s90, %s91
      %p100 = scmp.eq.s32.totalorder %s24, 0
      %p101 = por %p99, %p100
      %p102 = scmp.ne.s32.totalorder %s90, %s91
      %p103 = scmp.eq.s32.totalorder %s25, 1
      %p104 = por %p102, %p103
      %p106 = scmp.ne.s32.totalorder %s91, %s105
      %p107 = scmp.eq.s32.totalorder %s25, 0
      %p108 = por %p106, %p107
      %s110 = sadd.s32 %s109, 1
      %p113 = scmp.eq.s32.totalorder %s19, 1
      %p114 = scmp.ne.s32.totalorder %s109, %s111
      %p115 = scmp.eq.s32.totalorder %s19, 0
      %p116 = por %p114, %p115
      %p117 = scmp.ne.s32.totalorder %s109, %s111
      %p118 = scmp.eq.s32.totalorder %s24, 1
      %p119 = por %p117, %p118
      %p120 = scmp.ne.s32.totalorder %s111, %s112
      %p121 = scmp.eq.s32.totalorder %s24, 0
      %p122 = por %p120, %p121
      %p123 = scmp.ne.s32.totalorder %s111, %s112
      %p124 = scmp.eq.s32.totalorder %s25, 1
      %p125 = por %p123, %p124
      %p127 = scmp.ne.s32.totalorder %s112, %s126
      %p128 = scmp.eq.s32.totalorder %s25, 0
      %p129 = por %p127, %p128
      %s130 = ssub.s32 %s26, %s38
      %s131 = ssub.s32 %s27, %s34
      %s132 = sor.u32 %s130, %s131
      %p133 = scmp.eq.s32.totalorder %s132, 0
      %s135 = sadd.s32 %s134, 1
      %s136 = scalar_select %p133, %s134, %s135
      %p139 = pneg %p133
      %p140 = scmp.eq.s32.totalorder %s19, 1
      %p141 = por %p139, %p140
      %p142 = scmp.ne.s32.totalorder %s134, %s137
      %p143 = scmp.eq.s32.totalorder %s19, 0
      %p144 = por %p142, %p143
      %p145 = scmp.ne.s32.totalorder %s134, %s137
      %p146 = scmp.eq.s32.totalorder %s24, 1
      %p147 = por %p145, %p146
      %p148 = scmp.ne.s32.totalorder %s137, %s138
      %p149 = scmp.eq.s32.totalorder %s24, 0
      %p150 = por %p148, %p149
      %p151 = scmp.ne.s32.totalorder %s137, %s138
      %p152 = scmp.eq.s32.totalorder %s25, 1
      %p153 = por %p151, %p152
      %p155 = scmp.ne.s32.totalorder %s138, %s154
      %p156 = scmp.eq.s32.totalorder %s25, 0
      %p157 = por %p155, %p156
      %p158 = scmp.le.s32.totalorder 1, %s19
      %p159 = scmp.lt.s32.totalorder %s19, 3
      %p160 = pnand %p158, %p159
      %p161 = pneg %p160
      // Predicated region
      $region9: #{tpu_custom_call.1} parent=5 // pred_check
        _
      $region10: #{tpu_custom_call.1} parent=5 // pred_check_branch
        %163 = sbr.rel (%p160) target = $region12
      $region11: #{tpu_custom_call.1} parent=5 // pred_region
        %s164 = ssub.s32 %s19, 1
        // Predicated region
        $region13: #{tpu_custom_call.1} parent=11 // pred_check
          %p165 = pneg %p80
        $region14: #{tpu_custom_call.1} parent=11 // pred_check_branch
          %167 = sbr.rel (%p165) target = $region16
        $region15: #{tpu_custom_call.1} parent=11 // pred_region
          %169 = vsyncadd [#allocation7], 0
          %s170 = sshll.u32 %s1, 4
          %s171 = int_to_ptr.hbm [resolvable:$true] %s170
          %s172 = sshll.u32 [#allocation6], 4
          %s173 = int_to_ptr.vmem [resolvable:$true] %s172
          %178 = dma.hbm_to_vmem [thread:$0]  %s171, 2048, %s173, [#allocation7], 128, 128, 8
        $region16: #{tpu_custom_call.1} parent=11 // pred_fallthru
          _
        // Predicated region
        $region17: #{tpu_custom_call.1} parent=11 // pred_check
          %p179 = pneg %p101
        $region18: #{tpu_custom_call.1} parent=11 // pred_check_branch
          %181 = sbr.rel (%p179) target = $region20
        $region19: #{tpu_custom_call.1} parent=11 // pred_region
          %183 = vsyncadd [#allocation5], 0
          %s185 = sshll.u32 %s2, 4
          %s186 = int_to_ptr.vmem [resolvable:$true] %s185
          %188 = dma.vmem_to_smem %s186, 16, [#allocation8], [#allocation5]
        $region20: #{tpu_custom_call.1} parent=11 // pred_fallthru
          _
        // Predicated region
        $region21: #{tpu_custom_call.1} parent=11 // pred_check
          %p189 = pneg %p122
        $region22: #{tpu_custom_call.1} parent=11 // pred_check_branch
          %191 = sbr.rel (%p189) target = $region24
        $region23: #{tpu_custom_call.1} parent=11 // pred_region
          %193 = vsyncadd [#allocation10], 0
          %s195 = sshll.u32 %s3, 4
          %s196 = int_to_ptr.vmem [resolvable:$true] %s195
          %198 = dma.vmem_to_smem %s196, 16, [#allocation9], [#allocation10]
        $region24: #{tpu_custom_call.1} parent=11 // pred_fallthru
          _
      $region12: #{tpu_custom_call.1} parent=5 // pred_fallthru
        _
      %p199 = scmp.lt.s32.totalorder %s19, 2
      // Predicated region
      $region25: #{tpu_custom_call.1} parent=5 // pred_check
        %p200 = pneg %p199
      $region26: #{tpu_custom_call.1} parent=5 // pred_check_branch
        %202 = sbr.rel (%p200) target = $region28
      $region27: #{tpu_custom_call.1} parent=5 // pred_region
        // Predicated region
        $region29: #{tpu_custom_call.1} parent=27 // pred_check
          %p203 = pneg %p53
        $region30: #{tpu_custom_call.1} parent=27 // pred_check_branch
          %205 = sbr.rel (%p203) target = $region32
        $region31: #{tpu_custom_call.1} parent=27 // pred_region
          %s206 = sand.u32 %s43, 1
          %s207 = scalar_lea.sflag [#allocation3], %s206
          %s208 = sand.u32 %s43, 1
          %s209 = smul.addr %s208, 32
          %s210 = scalar_lea.vmem [#allocation2], %s209
          %212 = vsyncadd %s207, 0
          %s213 = smul.addr %s26, 4
          %s214 = sadd.s32 %s27, %s213
          %s215 = smul.addr %s214, 8
          %s216 = scalar_lea.hbm %s0, %s215
          %s217 = sshll.u32 %s216, 4
          %s218 = int_to_ptr.hbm [resolvable:$true] %s217
          %s219 = sshll.u32 %s210, 4
          %s220 = int_to_ptr.vmem [resolvable:$true] %s219
          %225 = dma.hbm_to_vmem [thread:$0]  %s218, 512, %s220, %s207, 128, 128, 8
        $region32: #{tpu_custom_call.1} parent=27 // pred_fallthru
          _
      $region28: #{tpu_custom_call.1} parent=5 // pred_fallthru
        _
      %p226 = scmp.le.s32.totalorder 1, %s19
      %p227 = scmp.lt.s32.totalorder %s19, 3
      %p228 = pnand %p226, %p227
      %p229 = pneg %p228
      // Predicated region
      $region33: #{tpu_custom_call.1} parent=5 // pred_check
        _
      $region34: #{tpu_custom_call.1} parent=5 // pred_check_branch
        %231 = sbr.rel (%p228) target = $region36
      $region35: #{tpu_custom_call.1} parent=5 // pred_region
        %s232 = ssub.s32 %s19, 1
        %s233 = sand.u32 %s46, 1
        %s234 = scalar_lea.sflag [#allocation3], %s233
        %s235 = sand.u32 %s46, 1
        %s236 = smul.addr %s235, 32
        %s237 = scalar_lea.vmem [#allocation2], %s236
        // Predicated region
        $region37: #{tpu_custom_call.1} parent=35 // pred_check
          %p238 = pneg %p59
        $region38: #{tpu_custom_call.1} parent=35 // pred_check_branch
          %240 = sbr.rel (%p238) target = $region40
        $region39: #{tpu_custom_call.1} parent=35 // pred_region
          %242 = dma.done %s234, 512
        $region40: #{tpu_custom_call.1} parent=35 // pred_fallthru
          _
        // Predicated region
        $region41: #{tpu_custom_call.1} parent=35 // pred_check
          %p243 = pneg %p80
        $region42: #{tpu_custom_call.1} parent=35 // pred_check_branch
          %245 = sbr.rel (%p243) target = $region44
        $region43: #{tpu_custom_call.1} parent=35 // pred_region
          %247 = dma.done [#allocation7], 2048
        $region44: #{tpu_custom_call.1} parent=35 // pred_fallthru
          _
        // Predicated region
        $region45: #{tpu_custom_call.1} parent=35 // pred_check
          %p248 = pneg %p101
        $region46: #{tpu_custom_call.1} parent=35 // pred_check_branch
          %250 = sbr.rel (%p248) target = $region48
        $region47: #{tpu_custom_call.1} parent=35 // pred_region
          %252 = dma.done [#allocation5], 16
        $region48: #{tpu_custom_call.1} parent=35 // pred_fallthru
          _
        // Predicated region
        $region49: #{tpu_custom_call.1} parent=35 // pred_check
          %p253 = pneg %p122
        $region50: #{tpu_custom_call.1} parent=35 // pred_check_branch
          %255 = sbr.rel (%p253) target = $region52
        $region51: #{tpu_custom_call.1} parent=35 // pred_region
          %257 = dma.done [#allocation10], 16
        $region52: #{tpu_custom_call.1} parent=35 // pred_fallthru
          _
        %258 = sfence
        %s259 = sand.u32 %s46, 1
        %s260 = scalar_lea.sflag [#allocation3], %s259
        %s261 = sand.u32 %s46, 1
        %s262 = smul.addr %s261, 32
        %s263 = scalar_lea.vmem [#allocation2], %s262
        %p264 = pneg %p59
        %p265 = pneg %p56
        %p266 = pneg %p80
        %p267 = pneg %p77
        %p268 = pneg %p101
        %p269 = pneg %p98
        %p270 = pneg %p122
        %p271 = pneg %p119
        %p272 = pneg %p150
        %p273 = pneg %p147
        %s274 = sand.u32 %s137, 1
        %s275 = scalar_lea.sflag [#allocation4], %s274
        %s276 = sand.u32 %s137, 1
        %s277 = smul.addr %s276, 32
        %s278 = scalar_lea.vmem [#allocation11], %s277
        %v279 = vld [vmem:[%s237] sm:$0xff]
        %s280 = scalar_lea.vmem %s237, 8 [#allocation2]
        %v281 = vld [vmem:[%s280] sm:$0xff]
        %s282 = scalar_lea.vmem %s237, 16 [#allocation2]
        %v283 = vld [vmem:[%s282] sm:$0xff]
        %s284 = scalar_lea.vmem %s237, 24 [#allocation2]
        %v285 = vld [vmem:[%s284] sm:$0xff]
        %s286 = sld [smem:[#allocation8]]
        %v287 = vstv %s286
        %v288 = vmul.f32 %v279, %v287
        %s289 = sld [smem:[#allocation8 + $0x10]]
        %v290 = vstv %s289
        %v291 = vmul.f32 %v281, %v290
        %v292 = vadd.f32 %v288, %v291
        %s293 = sld [smem:[#allocation8 + $0x20]]
        %v294 = vstv %s293
        %v295 = vmul.f32 %v283, %v294
        %v296 = vadd.f32 %v292, %v295
        %s297 = sld [smem:[#allocation8 + $0x30]]
        %v298 = vstv %s297
        %v299 = vmul.f32 %v285, %v298
        %v300 = vadd.f32 %v296, %v299
        %v301 = vld [vmem:[#allocation6] sm:$0xff]
        %v302 = vld [vmem:[#allocation6 + $0x8] sm:$0xff]
        %v303 = vld [vmem:[#allocation6 + $0x10] sm:$0xff]
        %v304 = vld [vmem:[#allocation6 + $0x18] sm:$0xff]
        %s305 = sld [smem:[#allocation8 + $0x1]]
        %v306 = vstv %s305
        %v307 = vmul.f32 %v279, %v306
        %s308 = sld [smem:[#allocation8 + $0x11]]
        %v309 = vstv %s308
        %v310 = vmul.f32 %v281, %v309
        %v311 = vadd.f32 %v307, %v310
        %s312 = sld [smem:[#allocation8 + $0x21]]
        %v313 = vstv %s312
        %v314 = vmul.f32 %v283, %v313
        %v315 = vadd.f32 %v311, %v314
        %s316 = sld [smem:[#allocation8 + $0x31]]
        %v317 = vstv %s316
        %v318 = vmul.f32 %v285, %v317
        %v319 = vadd.f32 %v315, %v318
        %s320 = scalar_lea.vmem [#allocation6], 32
        %v321 = vld [vmem:[%s320] sm:$0xff]
        %v322 = vld [vmem:[%s320 + $0x8] sm:$0xff]
        %v323 = vld [vmem:[%s320 + $0x10] sm:$0xff]
        %v324 = vld [vmem:[%s320 + $0x18] sm:$0xff]
        %vm325 = vcmask 261120
        %v327 = vsel %vm325, %v319, 0
        %329 = vmatpush.msra.mxu0 0.0
        %330 = vmatpush.msra.mxu0 0.0
        %331 = vmatpush.msra.mxu0 0.0
        %332 = vmatpush.msra.mxu0 0.0
        %333 = vmatpush.msra.mxu0 0.0
        %334 = vmatpush.msra.mxu0 0.0
        %335 = vmatpush.msra.mxu0 0.0
        %336 = vmatpush.msra.mxu0 0.0
        %337 = vmatpush.msra.mxu0 0.0
        %338 = vmatpush.msra.mxu0 0.0
        %339 = vmatpush.msra.mxu0 0.0
        %340 = vmatpush.msra.mxu0 0.0
        %341 = vmatpush.msra.mxu0 %v324
        %342 = vmatpush.msra.mxu0 %v323
        %343 = vmatpush.msra.mxu0 %v322
        %344 = vmatpush.msra.mxu0 %v321
        %345 = vmatmul.f32.gmra.mxu0 %v327
        %v346 = vpop.f32.mrf.mxu0
        %v347 = vadd.f32 0.0, %v346
        %348 = vdwg.mxu0
        %v350 = vsel %vm325, %v300, 0
        %352 = vmatpush.msra.mxu0 0.0
        %353 = vmatpush.msra.mxu0 0.0
        %354 = vmatpush.msra.mxu0 0.0
        %355 = vmatpush.msra.mxu0 0.0
        %356 = vmatpush.msra.mxu0 0.0
        %357 = vmatpush.msra.mxu0 0.0
        %358 = vmatpush.msra.mxu0 0.0
        %359 = vmatpush.msra.mxu0 0.0
        %360 = vmatpush.msra.mxu0 0.0
        %361 = vmatpush.msra.mxu0 0.0
        %362 = vmatpush.msra.mxu0 0.0
        %363 = vmatpush.msra.mxu0 0.0
        %364 = vmatpush.msra.mxu0 %v304
        %365 = vmatpush.msra.mxu0 %v303
        %366 = vmatpush.msra.mxu0 %v302
        %367 = vmatpush.msra.mxu0 %v301
        %368 = vmatmul.f32.gmra.mxu0 %v350
        %v369 = vpop.f32.mrf.mxu0
        %v370 = vadd.f32 %v347, %v369
        %371 = vdwg.mxu0
        %s372 = sld [smem:[#allocation8 + $0x2]]
        %v373 = vstv %s372
        %v374 = vmul.f32 %v279, %v373
        %s375 = sld [smem:[#allocation8 + $0x12]]
        %v376 = vstv %s375
        %v377 = vmul.f32 %v281, %v376
        %v378 = vadd.f32 %v374, %v377
        %s379 = sld [smem:[#allocation8 + $0x22]]
        %v380 = vstv %s379
        %v381 = vmul.f32 %v283, %v380
        %v382 = vadd.f32 %v378, %v381
        %s383 = sld [smem:[#allocation8 + $0x32]]
        %v384 = vstv %s383
        %v385 = vmul.f32 %v285, %v384
        %v386 = vadd.f32 %v382, %v385
        %s387 = scalar_lea.vmem [#allocation6], 64
        %v388 = vld [vmem:[%s387] sm:$0xff]
        %v389 = vld [vmem:[%s387 + $0x8] sm:$0xff]
        %v390 = vld [vmem:[%s387 + $0x10] sm:$0xff]
        %v391 = vld [vmem:[%s387 + $0x18] sm:$0xff]
        %v393 = vsel %vm325, %v386, 0
        %395 = vmatpush.msra.mxu0 0.0
        %396 = vmatpush.msra.mxu0 0.0
        %397 = vmatpush.msra.mxu0 0.0
        %398 = vmatpush.msra.mxu0 0.0
        %399 = vmatpush.msra.mxu0 0.0
        %400 = vmatpush.msra.mxu0 0.0
        %401 = vmatpush.msra.mxu0 0.0
        %402 = vmatpush.msra.mxu0 0.0
        %403 = vmatpush.msra.mxu0 0.0
        %404 = vmatpush.msra.mxu0 0.0
        %405 = vmatpush.msra.mxu0 0.0
        %406 = vmatpush.msra.mxu0 0.0
        %407 = vmatpush.msra.mxu0 %v391
        %408 = vmatpush.msra.mxu0 %v390
        %409 = vmatpush.msra.mxu0 %v389
        %410 = vmatpush.msra.mxu0 %v388
        %411 = vmatmul.f32.gmra.mxu0 %v393
        %v412 = vpop.f32.mrf.mxu0
        %v413 = vadd.f32 0.0, %v412
        %414 = vdwg.mxu0
        %v415 = vadd.f32 %v370, %v413
        %s416 = sld [smem:[#allocation8 + $0x3]]
        %v417 = vstv %s416
        %v418 = vmul.f32 %v279, %v417
        %s419 = sld [smem:[#allocation8 + $0x13]]
        %v420 = vstv %s419
        %v421 = vmul.f32 %v281, %v420
        %v422 = vadd.f32 %v418, %v421
        %s423 = sld [smem:[#allocation8 + $0x23]]
        %v424 = vstv %s423
        %v425 = vmul.f32 %v283, %v424
        %v426 = vadd.f32 %v422, %v425
        %s427 = sld [smem:[#allocation8 + $0x33]]
        %v428 = vstv %s427
        %v429 = vmul.f32 %v285, %v428
        %v430 = vadd.f32 %v426, %v429
        %s431 = scalar_lea.vmem [#allocation6], 96
        %v432 = vld [vmem:[%s431] sm:$0xff]
        %v433 = vld [vmem:[%s431 + $0x8] sm:$0xff]
        %v434 = vld [vmem:[%s431 + $0x10] sm:$0xff]
        %v435 = vld [vmem:[%s431 + $0x18] sm:$0xff]
        %v437 = vsel %vm325, %v430, 0
        %439 = vmatpush.msra.mxu0 0.0
        %440 = vmatpush.msra.mxu0 0.0
        %441 = vmatpush.msra.mxu0 0.0
        %442 = vmatpush.msra.mxu0 0.0
        %443 = vmatpush.msra.mxu0 0.0
        %444 = vmatpush.msra.mxu0 0.0
        %445 = vmatpush.msra.mxu0 0.0
        %446 = vmatpush.msra.mxu0 0.0
        %447 = vmatpush.msra.mxu0 0.0
        %448 = vmatpush.msra.mxu0 0.0
        %449 = vmatpush.msra.mxu0 0.0
        %450 = vmatpush.msra.mxu0 0.0
        %451 = vmatpush.msra.mxu0 %v435
        %452 = vmatpush.msra.mxu0 %v434
        %453 = vmatpush.msra.mxu0 %v433
        %454 = vmatpush.msra.mxu0 %v432
        %455 = vmatmul.f32.gmra.mxu0 %v437
        %v456 = vpop.f32.mrf.mxu0
        %v457 = vadd.f32 0.0, %v456
        %458 = vdwg.mxu0
        %v459 = vadd.f32 %v415, %v457
        %s460 = sld [smem:[#allocation9]]
        %v461 = vstv %s460
        %v462 = vadd.f32 %v459, %v461
        %463 = vst [vmem:[%s278] sm:$0xff] %v462
        %s464 = sld [smem:[#allocation8 + $0x4]]
        %v465 = vstv %s464
        %v466 = vmul.f32 %v279, %v465
        %s467 = sld [smem:[#allocation8 + $0x14]]
        %v468 = vstv %s467
        %v469 = vmul.f32 %v281, %v468
        %v470 = vadd.f32 %v466, %v469
        %s471 = sld [smem:[#allocation8 + $0x24]]
        %v472 = vstv %s471
        %v473 = vmul.f32 %v283, %v472
        %v474 = vadd.f32 %v470, %v473
        %s475 = sld [smem:[#allocation8 + $0x34]]
        %v476 = vstv %s475
        %v477 = vmul.f32 %v285, %v476
        %v478 = vadd.f32 %v474, %v477
        %v479 = vld [vmem:[#allocation6] sm:$0xff]
        %v480 = vld [vmem:[#allocation6 + $0x8] sm:$0xff]
        %v481 = vld [vmem:[#allocation6 + $0x10] sm:$0xff]
        %v482 = vld [vmem:[#allocation6 + $0x18] sm:$0xff]
        %s483 = sld [smem:[#allocation8 + $0x5]]
        %v484 = vstv %s483
        %v485 = vmul.f32 %v279, %v484
        %s486 = sld [smem:[#allocation8 + $0x15]]
        %v487 = vstv %s486
        %v488 = vmul.f32 %v281, %v487
        %v489 = vadd.f32 %v485, %v488
        %s490 = sld [smem:[#allocation8 + $0x25]]
        %v491 = vstv %s490
        %v492 = vmul.f32 %v283, %v491
        %v493 = vadd.f32 %v489, %v492
        %s494 = sld [smem:[#allocation8 + $0x35]]
        %v495 = vstv %s494
        %v496 = vmul.f32 %v285, %v495
        %v497 = vadd.f32 %v493, %v496
        %v498 = vld [vmem:[%s320] sm:$0xff]
        %v499 = vld [vmem:[%s320 + $0x8] sm:$0xff]
        %v500 = vld [vmem:[%s320 + $0x10] sm:$0xff]
        %v501 = vld [vmem:[%s320 + $0x18] sm:$0xff]
        %v503 = vsel %vm325, %v497, 0
        %505 = vmatpush.msra.mxu0 0.0
        %506 = vmatpush.msra.mxu0 0.0
        %507 = vmatpush.msra.mxu0 0.0
        %508 = vmatpush.msra.mxu0 0.0
        %509 = vmatpush.msra.mxu0 0.0
        %510 = vmatpush.msra.mxu0 0.0
        %511 = vmatpush.msra.mxu0 0.0
        %512 = vmatpush.msra.mxu0 0.0
        %513 = vmatpush.msra.mxu0 0.0
        %514 = vmatpush.msra.mxu0 0.0
        %515 = vmatpush.msra.mxu0 0.0
        %516 = vmatpush.msra.mxu0 0.0
        %517 = vmatpush.msra.mxu0 %v501
        %518 = vmatpush.msra.mxu0 %v500
        %519 = vmatpush.msra.mxu0 %v499
        %520 = vmatpush.msra.mxu0 %v498
        %521 = vmatmul.f32.gmra.mxu0 %v503
        %v522 = vpop.f32.mrf.mxu0
        %v523 = vadd.f32 0.0, %v522
        %524 = vdwg.mxu0
        %v526 = vsel %vm325, %v478, 0
        %528 = vmatpush.msra.mxu0 0.0
        %529 = vmatpush.msra.mxu0 0.0
        %530 = vmatpush.msra.mxu0 0.0
        %531 = vmatpush.msra.mxu0 0.0
        %532 = vmatpush.msra.mxu0 0.0
        %533 = vmatpush.msra.mxu0 0.0
        %534 = vmatpush.msra.mxu0 0.0
        %535 = vmatpush.msra.mxu0 0.0
        %536 = vmatpush.msra.mxu0 0.0
        %537 = vmatpush.msra.mxu0 0.0
        %538 = vmatpush.msra.mxu0 0.0
        %539 = vmatpush.msra.mxu0 0.0
        %540 = vmatpush.msra.mxu0 %v482
        %541 = vmatpush.msra.mxu0 %v481
        %542 = vmatpush.msra.mxu0 %v480
        %543 = vmatpush.msra.mxu0 %v479
        %544 = vmatmul.f32.gmra.mxu0 %v526
        %v545 = vpop.f32.mrf.mxu0
        %v546 = vadd.f32 %v523, %v545
        %547 = vdwg.mxu0
        %s548 = sld [smem:[#allocation8 + $0x6]]
        %v549 = vstv %s548
        %v550 = vmul.f32 %v279, %v549
        %s551 = sld [smem:[#allocation8 + $0x16]]
        %v552 = vstv %s551
        %v553 = vmul.f32 %v281, %v552
        %v554 = vadd.f32 %v550, %v553
        %s555 = sld [smem:[#allocation8 + $0x26]]
        %v556 = vstv %s555
        %v557 = vmul.f32 %v283, %v556
        %v558 = vadd.f32 %v554, %v557
        %s559 = sld [smem:[#allocation8 + $0x36]]
        %v560 = vstv %s559
        %v561 = vmul.f32 %v285, %v560
        %v562 = vadd.f32 %v558, %v561
        %v563 = vld [vmem:[%s387] sm:$0xff]
        %v564 = vld [vmem:[%s387 + $0x8] sm:$0xff]
        %v565 = vld [vmem:[%s387 + $0x10] sm:$0xff]
        %v566 = vld [vmem:[%s387 + $0x18] sm:$0xff]
        %v568 = vsel %vm325, %v562, 0
        %570 = vmatpush.msra.mxu0 0.0
        %571 = vmatpush.msra.mxu0 0.0
        %572 = vmatpush.msra.mxu0 0.0
        %573 = vmatpush.msra.mxu0 0.0
        %574 = vmatpush.msra.mxu0 0.0
        %575 = vmatpush.msra.mxu0 0.0
        %576 = vmatpush.msra.mxu0 0.0
        %577 = vmatpush.msra.mxu0 0.0
        %578 = vmatpush.msra.mxu0 0.0
        %579 = vmatpush.msra.mxu0 0.0
        %580 = vmatpush.msra.mxu0 0.0
        %581 = vmatpush.msra.mxu0 0.0
        %582 = vmatpush.msra.mxu0 %v566
        %583 = vmatpush.msra.mxu0 %v565
        %584 = vmatpush.msra.mxu0 %v564
        %585 = vmatpush.msra.mxu0 %v563
        %586 = vmatmul.f32.gmra.mxu0 %v568
        %v587 = vpop.f32.mrf.mxu0
        %v588 = vadd.f32 0.0, %v587
        %589 = vdwg.mxu0
        %v590 = vadd.f32 %v546, %v588
        %s591 = sld [smem:[#allocation8 + $0x7]]
        %v592 = vstv %s591
        %v593 = vmul.f32 %v279, %v592
        %s594 = sld [smem:[#allocation8 + $0x17]]
        %v595 = vstv %s594
        %v596 = vmul.f32 %v281, %v595
        %v597 = vadd.f32 %v593, %v596
        %s598 = sld [smem:[#allocation8 + $0x27]]
        %v599 = vstv %s598
        %v600 = vmul.f32 %v283, %v599
        %v601 = vadd.f32 %v597, %v600
        %s602 = sld [smem:[#allocation8 + $0x37]]
        %v603 = vstv %s602
        %v604 = vmul.f32 %v285, %v603
        %v605 = vadd.f32 %v601, %v604
        %v606 = vld [vmem:[%s431] sm:$0xff]
        %v607 = vld [vmem:[%s431 + $0x8] sm:$0xff]
        %v608 = vld [vmem:[%s431 + $0x10] sm:$0xff]
        %v609 = vld [vmem:[%s431 + $0x18] sm:$0xff]
        %v611 = vsel %vm325, %v605, 0
        %613 = vmatpush.msra.mxu0 0.0
        %614 = vmatpush.msra.mxu0 0.0
        %615 = vmatpush.msra.mxu0 0.0
        %616 = vmatpush.msra.mxu0 0.0
        %617 = vmatpush.msra.mxu0 0.0
        %618 = vmatpush.msra.mxu0 0.0
        %619 = vmatpush.msra.mxu0 0.0
        %620 = vmatpush.msra.mxu0 0.0
        %621 = vmatpush.msra.mxu0 0.0
        %622 = vmatpush.msra.mxu0 0.0
        %623 = vmatpush.msra.mxu0 0.0
        %624 = vmatpush.msra.mxu0 0.0
        %625 = vmatpush.msra.mxu0 %v609
        %626 = vmatpush.msra.mxu0 %v608
        %627 = vmatpush.msra.mxu0 %v607
        %628 = vmatpush.msra.mxu0 %v606
        %629 = vmatmul.f32.gmra.mxu0 %v611
        %v630 = vpop.f32.mrf.mxu0
        %v631 = vadd.f32 0.0, %v630
        %632 = vdwg.mxu0
        %v633 = vadd.f32 %v590, %v631
        %s634 = sld [smem:[#allocation9 + $0x1]]
        %v635 = vstv %s634
        %v636 = vadd.f32 %v633, %v635
        %s637 = scalar_lea.vmem %s278, 8 [#allocation11]
        %638 = vst [vmem:[%s637] sm:$0xff] %v636
        %s639 = sld [smem:[#allocation8 + $0x8]]
        %v640 = vstv %s639
        %v641 = vmul.f32 %v279, %v640
        %s642 = sld [smem:[#allocation8 + $0x18]]
        %v643 = vstv %s642
        %v644 = vmul.f32 %v281, %v643
        %v645 = vadd.f32 %v641, %v644
        %s646 = sld [smem:[#allocation8 + $0x28]]
        %v647 = vstv %s646
        %v648 = vmul.f32 %v283, %v647
        %v649 = vadd.f32 %v645, %v648
        %s650 = sld [smem:[#allocation8 + $0x38]]
        %v651 = vstv %s650
        %v652 = vmul.f32 %v285, %v651
        %v653 = vadd.f32 %v649, %v652
        %v654 = vld [vmem:[#allocation6] sm:$0xff]
        %v655 = vld [vmem:[#allocation6 + $0x8] sm:$0xff]
        %v656 = vld [vmem:[#allocation6 + $0x10] sm:$0xff]
        %v657 = vld [vmem:[#allocation6 + $0x18] sm:$0xff]
        %s658 = sld [smem:[#allocation8 + $0x9]]
        %v659 = vstv %s658
        %v660 = vmul.f32 %v279, %v659
        %s661 = sld [smem:[#allocation8 + $0x19]]
        %v662 = vstv %s661
        %v663 = vmul.f32 %v281, %v662
        %v664 = vadd.f32 %v660, %v663
        %s665 = sld [smem:[#allocation8 + $0x29]]
        %v666 = vstv %s665
        %v667 = vmul.f32 %v283, %v666
        %v668 = vadd.f32 %v664, %v667
        %s669 = sld [smem:[#allocation8 + $0x39]]
        %v670 = vstv %s669
        %v671 = vmul.f32 %v285, %v670
        %v672 = vadd.f32 %v668, %v671
        %v673 = vld [vmem:[%s320] sm:$0xff]
        %v674 = vld [vmem:[%s320 + $0x8] sm:$0xff]
        %v675 = vld [vmem:[%s320 + $0x10] sm:$0xff]
        %v676 = vld [vmem:[%s320 + $0x18] sm:$0xff]
        %v678 = vsel %vm325, %v672, 0
        %680 = vmatpush.msra.mxu0 0.0
        %681 = vmatpush.msra.mxu0 0.0
        %682 = vmatpush.msra.mxu0 0.0
        %683 = vmatpush.msra.mxu0 0.0
        %684 = vmatpush.msra.mxu0 0.0
        %685 = vmatpush.msra.mxu0 0.0
        %686 = vmatpush.msra.mxu0 0.0
        %687 = vmatpush.msra.mxu0 0.0
        %688 = vmatpush.msra.mxu0 0.0
        %689 = vmatpush.msra.mxu0 0.0
        %690 = vmatpush.msra.mxu0 0.0
        %691 = vmatpush.msra.mxu0 0.0
        %692 = vmatpush.msra.mxu0 %v676
        %693 = vmatpush.msra.mxu0 %v675
        %694 = vmatpush.msra.mxu0 %v674
        %695 = vmatpush.msra.mxu0 %v673
        %696 = vmatmul.f32.gmra.mxu0 %v678
        %v697 = vpop.f32.mrf.mxu0
        %v698 = vadd.f32 0.0, %v697
        %699 = vdwg.mxu0
        %v701 = vsel %vm325, %v653, 0
        %703 = vmatpush.msra.mxu0 0.0
        %704 = vmatpush.msra.mxu0 0.0
        %705 = vmatpush.msra.mxu0 0.0
        %706 = vmatpush.msra.mxu0 0.0
        %707 = vmatpush.msra.mxu0 0.0
        %708 = vmatpush.msra.mxu0 0.0
        %709 = vmatpush.msra.mxu0 0.0
        %710 = vmatpush.msra.mxu0 0.0
        %711 = vmatpush.msra.mxu0 0.0
        %712 = vmatpush.msra.mxu0 0.0
        %713 = vmatpush.msra.mxu0 0.0
        %714 = vmatpush.msra.mxu0 0.0
        %715 = vmatpush.msra.mxu0 %v657
        %716 = vmatpush.msra.mxu0 %v656
        %717 = vmatpush.msra.mxu0 %v655
        %718 = vmatpush.msra.mxu0 %v654
        %719 = vmatmul.f32.gmra.mxu0 %v701
        %v720 = vpop.f32.mrf.mxu0
        %v721 = vadd.f32 %v698, %v720
        %722 = vdwg.mxu0
        %s723 = sld [smem:[#allocation8 + $0xa]]
        %v724 = vstv %s723
        %v725 = vmul.f32 %v279, %v724
        %s726 = sld [smem:[#allocation8 + $0x1a]]
        %v727 = vstv %s726
        %v728 = vmul.f32 %v281, %v727
        %v729 = vadd.f32 %v725, %v728
        %s730 = sld [smem:[#allocation8 + $0x2a]]
        %v731 = vstv %s730
        %v732 = vmul.f32 %v283, %v731
        %v733 = vadd.f32 %v729, %v732
        %s734 = sld [smem:[#allocation8 + $0x3a]]
        %v735 = vstv %s734
        %v736 = vmul.f32 %v285, %v735
        %v737 = vadd.f32 %v733, %v736
        %v738 = vld [vmem:[%s387] sm:$0xff]
        %v739 = vld [vmem:[%s387 + $0x8] sm:$0xff]
        %v740 = vld [vmem:[%s387 + $0x10] sm:$0xff]
        %v741 = vld [vmem:[%s387 + $0x18] sm:$0xff]
        %v743 = vsel %vm325, %v737, 0
        %745 = vmatpush.msra.mxu0 0.0
        %746 = vmatpush.msra.mxu0 0.0
        %747 = vmatpush.msra.mxu0 0.0
        %748 = vmatpush.msra.mxu0 0.0
        %749 = vmatpush.msra.mxu0 0.0
        %750 = vmatpush.msra.mxu0 0.0
        %751 = vmatpush.msra.mxu0 0.0
        %752 = vmatpush.msra.mxu0 0.0
        %753 = vmatpush.msra.mxu0 0.0
        %754 = vmatpush.msra.mxu0 0.0
        %755 = vmatpush.msra.mxu0 0.0
        %756 = vmatpush.msra.mxu0 0.0
        %757 = vmatpush.msra.mxu0 %v741
        %758 = vmatpush.msra.mxu0 %v740
        %759 = vmatpush.msra.mxu0 %v739
        %760 = vmatpush.msra.mxu0 %v738
        %761 = vmatmul.f32.gmra.mxu0 %v743
        %v762 = vpop.f32.mrf.mxu0
        %v763 = vadd.f32 0.0, %v762
        %764 = vdwg.mxu0
        %v765 = vadd.f32 %v721, %v763
        %s766 = sld [smem:[#allocation8 + $0xb]]
        %v767 = vstv %s766
        %v768 = vmul.f32 %v279, %v767
        %s769 = sld [smem:[#allocation8 + $0x1b]]
        %v770 = vstv %s769
        %v771 = vmul.f32 %v281, %v770
        %v772 = vadd.f32 %v768, %v771
        %s773 = sld [smem:[#allocation8 + $0x2b]]
        %v774 = vstv %s773
        %v775 = vmul.f32 %v283, %v774
        %v776 = vadd.f32 %v772, %v775
        %s777 = sld [smem:[#allocation8 + $0x3b]]
        %v778 = vstv %s777
        %v779 = vmul.f32 %v285, %v778
        %v780 = vadd.f32 %v776, %v779
        %v781 = vld [vmem:[%s431] sm:$0xff]
        %v782 = vld [vmem:[%s431 + $0x8] sm:$0xff]
        %v783 = vld [vmem:[%s431 + $0x10] sm:$0xff]
        %v784 = vld [vmem:[%s431 + $0x18] sm:$0xff]
        %v786 = vsel %vm325, %v780, 0
        %788 = vmatpush.msra.mxu0 0.0
        %789 = vmatpush.msra.mxu0 0.0
        %790 = vmatpush.msra.mxu0 0.0
        %791 = vmatpush.msra.mxu0 0.0
        %792 = vmatpush.msra.mxu0 0.0
        %793 = vmatpush.msra.mxu0 0.0
        %794 = vmatpush.msra.mxu0 0.0
        %795 = vmatpush.msra.mxu0 0.0
        %796 = vmatpush.msra.mxu0 0.0
        %797 = vmatpush.msra.mxu0 0.0
        %798 = vmatpush.msra.mxu0 0.0
        %799 = vmatpush.msra.mxu0 0.0
        %800 = vmatpush.msra.mxu0 %v784
        %801 = vmatpush.msra.mxu0 %v783
        %802 = vmatpush.msra.mxu0 %v782
        %803 = vmatpush.msra.mxu0 %v781
        %804 = vmatmul.f32.gmra.mxu0 %v786
        %v805 = vpop.f32.mrf.mxu0
        %v806 = vadd.f32 0.0, %v805
        %807 = vdwg.mxu0
        %v808 = vadd.f32 %v765, %v806
        %s809 = sld [smem:[#allocation9 + $0x2]]
        %v810 = vstv %s809
        %v811 = vadd.f32 %v808, %v810
        %s812 = scalar_lea.vmem %s278, 16 [#allocation11]
        %813 = vst [vmem:[%s812] sm:$0xff] %v811
        %s814 = sld [smem:[#allocation8 + $0xc]]
        %v815 = vstv %s814
        %v816 = vmul.f32 %v279, %v815
        %s817 = sld [smem:[#allocation8 + $0x1c]]
        %v818 = vstv %s817
        %v819 = vmul.f32 %v281, %v818
        %v820 = vadd.f32 %v816, %v819
        %s821 = sld [smem:[#allocation8 + $0x2c]]
        %v822 = vstv %s821
        %v823 = vmul.f32 %v283, %v822
        %v824 = vadd.f32 %v820, %v823
        %s825 = sld [smem:[#allocation8 + $0x3c]]
        %v826 = vstv %s825
        %v827 = vmul.f32 %v285, %v826
        %v828 = vadd.f32 %v824, %v827
        %v829 = vld [vmem:[#allocation6] sm:$0xff]
        %v830 = vld [vmem:[#allocation6 + $0x8] sm:$0xff]
        %v831 = vld [vmem:[#allocation6 + $0x10] sm:$0xff]
        %v832 = vld [vmem:[#allocation6 + $0x18] sm:$0xff]
        %s833 = sld [smem:[#allocation8 + $0xd]]
        %v834 = vstv %s833
        %v835 = vmul.f32 %v279, %v834
        %s836 = sld [smem:[#allocation8 + $0x1d]]
        %v837 = vstv %s836
        %v838 = vmul.f32 %v281, %v837
        %v839 = vadd.f32 %v835, %v838
        %s840 = sld [smem:[#allocation8 + $0x2d]]
        %v841 = vstv %s840
        %v842 = vmul.f32 %v283, %v841
        %v843 = vadd.f32 %v839, %v842
        %s844 = sld [smem:[#allocation8 + $0x3d]]
        %v845 = vstv %s844
        %v846 = vmul.f32 %v285, %v845
        %v847 = vadd.f32 %v843, %v846
        %v848 = vld [vmem:[%s320] sm:$0xff]
        %v849 = vld [vmem:[%s320 + $0x8] sm:$0xff]
        %v850 = vld [vmem:[%s320 + $0x10] sm:$0xff]
        %v851 = vld [vmem:[%s320 + $0x18] sm:$0xff]
        %v853 = vsel %vm325, %v847, 0
        %855 = vmatpush.msra.mxu0 0.0
        %856 = vmatpush.msra.mxu0 0.0
        %857 = vmatpush.msra.mxu0 0.0
        %858 = vmatpush.msra.mxu0 0.0
        %859 = vmatpush.msra.mxu0 0.0
        %860 = vmatpush.msra.mxu0 0.0
        %861 = vmatpush.msra.mxu0 0.0
        %862 = vmatpush.msra.mxu0 0.0
        %863 = vmatpush.msra.mxu0 0.0
        %864 = vmatpush.msra.mxu0 0.0
        %865 = vmatpush.msra.mxu0 0.0
        %866 = vmatpush.msra.mxu0 0.0
        %867 = vmatpush.msra.mxu0 %v851
        %868 = vmatpush.msra.mxu0 %v850
        %869 = vmatpush.msra.mxu0 %v849
        %870 = vmatpush.msra.mxu0 %v848
        %871 = vmatmul.f32.gmra.mxu0 %v853
        %v872 = vpop.f32.mrf.mxu0
        %v873 = vadd.f32 0.0, %v872
        %874 = vdwg.mxu0
        %v876 = vsel %vm325, %v828, 0
        %878 = vmatpush.msra.mxu0 0.0
        %879 = vmatpush.msra.mxu0 0.0
        %880 = vmatpush.msra.mxu0 0.0
        %881 = vmatpush.msra.mxu0 0.0
        %882 = vmatpush.msra.mxu0 0.0
        %883 = vmatpush.msra.mxu0 0.0
        %884 = vmatpush.msra.mxu0 0.0
        %885 = vmatpush.msra.mxu0 0.0
        %886 = vmatpush.msra.mxu0 0.0
        %887 = vmatpush.msra.mxu0 0.0
        %888 = vmatpush.msra.mxu0 0.0
        %889 = vmatpush.msra.mxu0 0.0
        %890 = vmatpush.msra.mxu0 %v832
        %891 = vmatpush.msra.mxu0 %v831
        %892 = vmatpush.msra.mxu0 %v830
        %893 = vmatpush.msra.mxu0 %v829
        %894 = vmatmul.f32.gmra.mxu0 %v876
        %v895 = vpop.f32.mrf.mxu0
        %v896 = vadd.f32 %v873, %v895
        %897 = vdwg.mxu0
        %s898 = sld [smem:[#allocation8 + $0xe]]
        %v899 = vstv %s898
        %v900 = vmul.f32 %v279, %v899
        %s901 = sld [smem:[#allocation8 + $0x1e]]
        %v902 = vstv %s901
        %v903 = vmul.f32 %v281, %v902
        %v904 = vadd.f32 %v900, %v903
        %s905 = sld [smem:[#allocation8 + $0x2e]]
        %v906 = vstv %s905
        %v907 = vmul.f32 %v283, %v906
        %v908 = vadd.f32 %v904, %v907
        %s909 = sld [smem:[#allocation8 + $0x3e]]
        %v910 = vstv %s909
        %v911 = vmul.f32 %v285, %v910
        %v912 = vadd.f32 %v908, %v911
        %v913 = vld [vmem:[%s387] sm:$0xff]
        %v914 = vld [vmem:[%s387 + $0x8] sm:$0xff]
        %v915 = vld [vmem:[%s387 + $0x10] sm:$0xff]
        %v916 = vld [vmem:[%s387 + $0x18] sm:$0xff]
        %v918 = vsel %vm325, %v912, 0
        %920 = vmatpush.msra.mxu0 0.0
        %921 = vmatpush.msra.mxu0 0.0
        %922 = vmatpush.msra.mxu0 0.0
        %923 = vmatpush.msra.mxu0 0.0
        %924 = vmatpush.msra.mxu0 0.0
        %925 = vmatpush.msra.mxu0 0.0
        %926 = vmatpush.msra.mxu0 0.0
        %927 = vmatpush.msra.mxu0 0.0
        %928 = vmatpush.msra.mxu0 0.0
        %929 = vmatpush.msra.mxu0 0.0
        %930 = vmatpush.msra.mxu0 0.0
        %931 = vmatpush.msra.mxu0 0.0
        %932 = vmatpush.msra.mxu0 %v916
        %933 = vmatpush.msra.mxu0 %v915
        %934 = vmatpush.msra.mxu0 %v914
        %935 = vmatpush.msra.mxu0 %v913
        %936 = vmatmul.f32.gmra.mxu0 %v918
        %v937 = vpop.f32.mrf.mxu0
        %v938 = vadd.f32 0.0, %v937
        %939 = vdwg.mxu0
        %v940 = vadd.f32 %v896, %v938
        %s941 = sld [smem:[#allocation8 + $0xf]]
        %v942 = vstv %s941
        %v943 = vmul.f32 %v279, %v942
        %s944 = sld [smem:[#allocation8 + $0x1f]]
        %v945 = vstv %s944
        %v946 = vmul.f32 %v281, %v945
        %v947 = vadd.f32 %v943, %v946
        %s948 = sld [smem:[#allocation8 + $0x2f]]
        %v949 = vstv %s948
        %v950 = vmul.f32 %v283, %v949
        %v951 = vadd.f32 %v947, %v950
        %s952 = sld [smem:[#allocation8 + $0x3f]]
        %v953 = vstv %s952
        %v954 = vmul.f32 %v285, %v953
        %v955 = vadd.f32 %v951, %v954
        %v956 = vld [vmem:[%s431] sm:$0xff]
        %v957 = vld [vmem:[%s431 + $0x8] sm:$0xff]
        %v958 = vld [vmem:[%s431 + $0x10] sm:$0xff]
        %v959 = vld [vmem:[%s431 + $0x18] sm:$0xff]
        %v961 = vsel %vm325, %v955, 0
        %963 = vmatpush.msra.mxu0 0.0
        %964 = vmatpush.msra.mxu0 0.0
        %965 = vmatpush.msra.mxu0 0.0
        %966 = vmatpush.msra.mxu0 0.0
        %967 = vmatpush.msra.mxu0 0.0
        %968 = vmatpush.msra.mxu0 0.0
        %969 = vmatpush.msra.mxu0 0.0
        %970 = vmatpush.msra.mxu0 0.0
        %971 = vmatpush.msra.mxu0 0.0
        %972 = vmatpush.msra.mxu0 0.0
        %973 = vmatpush.msra.mxu0 0.0
        %974 = vmatpush.msra.mxu0 0.0
        %975 = vmatpush.msra.mxu0 %v959
        %976 = vmatpush.msra.mxu0 %v958
        %977 = vmatpush.msra.mxu0 %v957
        %978 = vmatpush.msra.mxu0 %v956
        %979 = vmatmul.f32.gmra.mxu0 %v961
        %v980 = vpop.f32.mrf.mxu0
        %v981 = vadd.f32 0.0, %v980
        %982 = vdwg.mxu0
        %v983 = vadd.f32 %v940, %v981
        %s984 = sld [smem:[#allocation9 + $0x3]]
        %v985 = vstv %s984
        %v986 = vadd.f32 %v983, %v985
        %s987 = scalar_lea.vmem %s278, 24 [#allocation11]
        %988 = vst [vmem:[%s987] sm:$0xff] %v986
        %s989 = sand.u32 %s137, 1
        %s990 = scalar_lea.sflag [#allocation4], %s989
        %s991 = sand.u32 %s137, 1
        %s992 = smul.addr %s991, 32
        %s993 = scalar_lea.vmem [#allocation11], %s992
        // Predicated region
        $region53: #{tpu_custom_call.1} parent=35 // pred_check
          %p994 = pneg %p147
        $region54: #{tpu_custom_call.1} parent=35 // pred_check_branch
          %996 = sbr.rel (%p994) target = $region56
        $region55: #{tpu_custom_call.1} parent=35 // pred_region
          %998 = vsyncadd %s990, 0
          %s999 = smul.addr %s28, 4
          %s1000 = sadd.s32 %s29, %s999
          %s1001 = smul.addr %s1000, 8
          %s1002 = scalar_lea.hbm %s4, %s1001
          %s1003 = sshll.u32 %s993, 4
          %s1004 = int_to_ptr.vmem [resolvable:$true] %s1003
          %s1005 = sshll.u32 %s1002, 4
          %s1006 = int_to_ptr.hbm [resolvable:$true] %s1005
          %1011 = dma.vmem_to_hbm [thread:$0]  %s1004, 512, %s1006, %s990, 128, 128, 8
        $region56: #{tpu_custom_call.1} parent=35 // pred_fallthru
          _
      $region36: #{tpu_custom_call.1} parent=5 // pred_fallthru
        _
      %p1012 = scmp.le.s32.totalorder 2, %s19
      // Predicated region
      $region57: #{tpu_custom_call.1} parent=5 // pred_check
        %p1013 = pneg %p1012
      $region58: #{tpu_custom_call.1} parent=5 // pred_check_branch
        %1015 = sbr.rel (%p1013) target = $region60
      $region59: #{tpu_custom_call.1} parent=5 // pred_region
        %s1016 = ssub.s32 %s19, 2
        // Predicated region
        $region61: #{tpu_custom_call.1} parent=59 // pred_check
          %p1017 = pneg %p153
        $region62: #{tpu_custom_call.1} parent=59 // pred_check_branch
          %1019 = sbr.rel (%p1017) target = $region64
        $region63: #{tpu_custom_call.1} parent=59 // pred_region
          %s1020 = sand.u32 %s138, 1
          %s1021 = scalar_lea.sflag [#allocation4], %s1020
          %s1022 = sand.u32 %s138, 1
          %s1023 = smul.addr %s1022, 32
          %s1024 = scalar_lea.vmem [#allocation11], %s1023
          %1026 = dma.done %s1021, 512
        $region64: #{tpu_custom_call.1} parent=59 // pred_fallthru
          _
      $region60: #{tpu_custom_call.1} parent=5 // pred_fallthru
        _
    $region6: #{tpu_custom_call.1} parent=1 // loop_footer
      %s23 = sadd.s32 1, %s19
    $region7: #{tpu_custom_call.1} parent=1 // loop_footer_branch
      %18 = sbr.rel target = $region3
    $region8: #{tpu_custom_call.1} parent=1 // loop_exit
      _
    %1027 = vsyncpa [#allocation3], 1
    %s1028 = scalar_lea.sflag [#allocation3], 1
    %1029 = vsyncpa %s1028, 1
    %1030 = vsyncpa [#allocation7], 1
    %1031 = vsyncpa [#allocation4], 1
    %s1032 = scalar_lea.sflag [#allocation4], 1
    %1033 = vsyncpa %s1032, 1
    %1034 = vsyncpa [#allocation5], 1
    %s1035 = scalar_lea.sflag [#allocation5], 1
    %1036 = vsyncpa %s1035, 1
    %1037 = vsyncpa [#allocation10], 1

</llo_original>
